<compile_context>
chip_gen: v6e
topology: v6e:2x2x1
jax: 0.10.0
libtpu: 0.0.40
codegen_flags: <defaults>
</compile_context>

<pallas_src>
import jax
import jax.numpy as jnp
from jax.experimental import pallas as pl
from jax.experimental.pallas import tpu as pltpu

EPS = 1e-5
SUBL = 8                              # f32 sublane count (stats accumulator rows)
VMEM_BUDGET = 44 * 1024 * 1024        # tile-selection budget: fits v7x's 64 MiB VMEM
VMEM_LIMIT = 64 * 1024 * 1024         # compiler cap (was 32 MiB; v5e/v6e have 128 MiB)


def _round_up(x, m):
    return (x + m - 1) // m * m


# ------------------------- phase 1: stats (recompute path) -------------------------
def _stats_kernel(p_ref, w_ref, sum_ref, sq_ref):
    # p_ref:   (TILE_P, K_pad) bf16 im2col patches
    # w_ref:   (K_pad, C_pad)  bf16 conv weight (resident across the grid)
    # sum_ref: (SUBL, C_pad)   f32 per-core running channel sum (rows identical)
    # sq_ref:  (SUBL, C_pad)   f32 per-core running channel sum of squares
    @pl.when(pl.program_id(1) == 0)
    def _():
        sum_ref[...] = jnp.zeros_like(sum_ref)
        sq_ref[...] = jnp.zeros_like(sq_ref)

    c = jnp.dot(p_ref[...], w_ref[...], preferred_element_type=jnp.float32)
    sum_ref[...] += jnp.sum(c, axis=0, keepdims=True)
    sq_ref[...] += jnp.sum(c * c, axis=0, keepdims=True)


# ------------------- phase 1: stats + bf16 conv stash (deep path) ------------------
def _stats_stash_kernel(p_ref, w_ref, conv_ref, sum_ref, sq_ref):
    @pl.when(pl.program_id(1) == 0)
    def _():
        sum_ref[...] = jnp.zeros_like(sum_ref)
        sq_ref[...] = jnp.zeros_like(sq_ref)

    c = jnp.dot(p_ref[...], w_ref[...], preferred_element_type=jnp.float32)
    conv_ref[...] = c.astype(conv_ref.dtype)           # bf16 stash for phase 2
    sum_ref[...] += jnp.sum(c, axis=0, keepdims=True)
    sq_ref[...] += jnp.sum(c * c, axis=0, keepdims=True)


# --------------------- phase 2: recompute GEMM + fused BN + ReLU -------------------
def _apply_recompute_kernel(p_ref, w_ref, scale_ref, shift_ref, o_ref):
    c = jnp.dot(p_ref[...], w_ref[...], preferred_element_type=jnp.float32)
    y = c * scale_ref[...] + shift_ref[...]
    o_ref[...] = jnp.maximum(y, 0.0).astype(o_ref.dtype)


# ------------------ phase 2: elementwise BN + ReLU on the conv stash ---------------
def _apply_stash_kernel(conv_ref, scale_ref, shift_ref, o_ref):
    y = conv_ref[...].astype(jnp.float32) * scale_ref[...] + shift_ref[...]
    o_ref[...] = jnp.maximum(y, 0.0).astype(o_ref.dtype)


def single_conv(x_nchw, weight, bias, gamma, beta, kernel_size=3, tile_p=None):
    """Pallas SingleConv forward. x_nchw: (N, C_in, H, W) float32."""
    N, C_in, H, W = x_nchw.shape
    C_out = weight.shape[0]
    k = kernel_size
    pad = (k - 1) // 2

    P = N * H * W
    K = k * k * C_in
    # bf16 sublane packing wants 16-row alignment on the weight's K dim; once K is
    # non-tiny, align to 128 so the contraction depth / patch lane dim is full.
    K_pad = _round_up(K, 128) if K > 64 else _round_up(K, 16)
    # Lane-dense output stores; 256-granular for wide layers (v6e/v7x MXU width).
    C_pad = _round_up(C_out, 256) if C_out > 128 else 128

    # Deep layers: stash the bf16 conv result instead of re-reading patches and
    # re-running the GEMM in phase 2 (patch re-read costs K_pad*2 B/row vs a
    # bf16 conv round trip of 4*C_pad B/row).
    use_stash = K_pad > 2 * C_pad

    # ------------------------- tile selection (VMEM budget) ------------------------
    def vmem_need(t):
        patches = 2 * t * K_pad * 2              # double-buffered bf16 patch tile
        weightb = 2 * K_pad * C_pad * 2          # weight block (assume 2 buffers)
        conv32 = t * C_pad * 4                   # f32 GEMM result
        out_bf = 2 * t * C_pad * 2               # double-buffered bf16 output tile
        ph1 = patches + weightb + conv32 + (out_bf if use_stash else 0)
        ph2 = (2 * out_bf + conv32) if use_stash else (patches + weightb + conv32 + out_bf)
        return max(ph1, ph2)

    if tile_p is None:
        tile_p = 16
        for cand in (2048, 1024, 512, 256, 128, 64, 32, 16):
            if vmem_need(cand) <= VMEM_BUDGET:
                tile_p = cand
                break
    # Keep both halves of the dual-core split busy and avoid padding a tiny
    # problem up to one oversized tile.
    tile_p = max(16, min(tile_p, _round_up(pl.cdiv(P, 2), 16)))
    TILE_P = _round_up(tile_p, 16)
    n_half = pl.cdiv(P, 2 * TILE_P)
    P_pad = 2 * n_half * TILE_P
    n_tiles = 2 * n_half

    # ------------------ im2col glue (pure XLA, bf16 -> half the traffic) -----------
    x = jnp.transpose(x_nchw, (0, 2, 3, 1)).astype(jnp.bfloat16)       # NHWC bf16
    xp = jnp.pad(x, ((0, 0), (pad, pad), (pad, pad), (0, 0)))
    slabs = [xp[:, dh:dh + H, dw:dw + W, :] for dh in range(k) for dw in range(k)]
    patches = jnp.concatenate(slabs, axis=-1).reshape(P, K)
    # Zero padding of rows/cols is exact for the GEMM and the stats (padded rows
    # contribute 0 to sum / sum-of-squares; we divide by the real P).
    patches_p = jnp.pad(patches, ((0, P_pad - P), (0, K_pad - K)))

    # torch weight (C_out, C_in, kh, kw) -> (kh, kw, C_in, C_out) -> (K, C_out)
    w2d = jnp.transpose(weight, (2, 3, 1, 0)).reshape(K, C_out)
    w2d = jnp.pad(w2d, ((0, K_pad - K), (0, C_pad - C_out))).astype(jnp.bfloat16)

    gemm_flops = 2 * P_pad * K_pad * C_pad
    patch_bytes = P_pad * K_pad * 2
    w_bytes = K_pad * C_pad * 2
    conv_bytes = P_pad * C_pad * 2

    # ------------- phase 1: per-channel sum / sum-of-squares (+ bf16 stash) --------
    p_spec = pl.BlockSpec((TILE_P, K_pad), lambda c, i: (c * n_half + i, 0))
    w_spec = pl.BlockSpec((K_pad, C_pad), lambda c, i: (0, 0))          # resident
    stats_shapes = (
        jax.ShapeDtypeStruct((2 * SUBL, C_pad), jnp.float32),
        jax.ShapeDtypeStruct((2 * SUBL, C_pad), jnp.float32),
    )
    stats_specs = (
        pl.BlockSpec((SUBL, C_pad), lambda c, i: (c, 0)),               # per-core accumulator
        pl.BlockSpec((SUBL, C_pad), lambda c, i: (c, 0)),
    )

    if use_stash:
        p1_out_shape = (jax.ShapeDtypeStruct((P_pad, C_pad), jnp.bfloat16),) + stats_shapes
        p1_out_specs = (pl.BlockSpec((TILE_P, C_pad), lambda c, i: (c * n_half + i, 0)),) + stats_specs
        p1_kernel = _stats_stash_kernel
        p1_bytes = patch_bytes + w_bytes + conv_bytes
    else:
        p1_out_shape = stats_shapes
        p1_out_specs = stats_specs
        p1_kernel = _stats_kernel
        p1_bytes = patch_bytes + w_bytes

    phase1 = pl.pallas_call(
        p1_kernel,
        out_shape=p1_out_shape,
        grid_spec=pltpu.PrefetchScalarGridSpec(
            num_scalar_prefetch=0,
            grid=(2, n_half),
            in_specs=[p_spec, w_spec],
            out_specs=p1_out_specs,
        ),
        compiler_params=pltpu.CompilerParams(
            # first axis parallel -> both v7x TensorCores run half the tiles;
            # second axis carries the per-core accumulators.
            dimension_semantics=("parallel", "arbitrary"),
            vmem_limit_bytes=VMEM_LIMIT,
        ),
        cost_estimate=pl.CostEstimate(
            flops=gemm_flops, transcendentals=0,
            bytes_accessed=p1_bytes + 4 * SUBL * C_pad * 4),
    )(patches_p, w2d)

    if use_stash:
        conv_bf16, s_sum, s_sq = phase1
    else:
        s_sum, s_sq = phase1

    # -------- tiny finalize (f32, on device): fold BN into one scale/shift ---------
    # Every row within a SUBL group holds the same per-core total; reduce the cores.
    sum_c = s_sum.reshape(2, SUBL, C_pad)[:, 0, :].sum(axis=0)
    sq_c = s_sq.reshape(2, SUBL, C_pad)[:, 0, :].sum(axis=0)

    gamma_p = jnp.pad(gamma.astype(jnp.float32), (0, C_pad - C_out))    # pad 0 -> dead lanes stay 0
    beta_p = jnp.pad(beta.astype(jnp.float32), (0, C_pad - C_out))

    mean_c = sum_c / P                                        # mean of conv WITHOUT bias
    var_c = jnp.maximum(sq_c / P - mean_c * mean_c, 0.0)      # clamp cancellation noise
    inv = jax.lax.rsqrt(var_c + EPS)
    scale = gamma_p * inv
    # The Conv2d bias shifts the activations and the batch mean identically, so it
    # cancels exactly in training-mode BatchNorm -> it never enters the kernel.
    shift = beta_p - mean_c * scale
    scale = scale.reshape(1, C_pad)
    shift = shift.reshape(1, C_pad)
    del bias  # unused by construction (see comment above)

    # --------------- phase 2: fused BN scale/shift + ReLU, bf16 output -------------
    if use_stash:
        out2d = pl.pallas_call(
            _apply_stash_kernel,
            out_shape=jax.ShapeDtypeStruct((P_pad, C_pad), jnp.bfloat16),
            grid_spec=pltpu.PrefetchScalarGridSpec(
                num_scalar_prefetch=0,
                grid=(n_tiles,),
                in_specs=[
                    pl.BlockSpec((TILE_P, C_pad), lambda i: (i, 0)),
                    pl.BlockSpec((1, C_pad), lambda i: (0, 0)),
                    pl.BlockSpec((1, C_pad), lambda i: (0, 0)),
                ],
                out_specs=pl.BlockSpec((TILE_P, C_pad), lambda i: (i, 0)),
            ),
            compiler_params=pltpu.CompilerParams(
                dimension_semantics=("parallel",),
                vmem_limit_bytes=VMEM_LIMIT,
            ),
            cost_estimate=pl.CostEstimate(
                flops=2 * P_pad * C_pad, transcendentals=0,
                bytes_accessed=2 * conv_bytes),
        )(conv_bf16, scale, shift)
    else:
        out2d = pl.pallas_call(
            _apply_recompute_kernel,
            out_shape=jax.ShapeDtypeStruct((P_pad, C_pad), jnp.bfloat16),
            grid_spec=pltpu.PrefetchScalarGridSpec(
                num_scalar_prefetch=0,
                grid=(n_tiles,),
                in_specs=[
                    pl.BlockSpec((TILE_P, K_pad), lambda i: (i, 0)),
                    pl.BlockSpec((K_pad, C_pad), lambda i: (0, 0)),     # resident
                    pl.BlockSpec((1, C_pad), lambda i: (0, 0)),
                    pl.BlockSpec((1, C_pad), lambda i: (0, 0)),
                ],
                out_specs=pl.BlockSpec((TILE_P, C_pad), lambda i: (i, 0)),
            ),
            compiler_params=pltpu.CompilerParams(
                dimension_semantics=("parallel",),
                vmem_limit_bytes=VMEM_LIMIT,
            ),
            cost_estimate=pl.CostEstimate(
                flops=gemm_flops, transcendentals=0,
                bytes_accessed=patch_bytes + w_bytes + conv_bytes),
        )(patches_p, w2d, scale, shift)

    # slice / reshape / NHWC->NCHW transpose happen in bf16 (half the traffic);
    # upcast only at the very end.
    out = out2d[:P, :C_out].reshape(N, H, W, C_out)
    out = jnp.transpose(out, (0, 3, 1, 2))
    return out.astype(x_nchw.dtype)


def ref_single_conv(x, w, b, gamma, beta):
    """Pure-JAX f32 reference (matches PyTorch training-mode forward)."""
    y = jax.lax.conv_general_dilated(
        x, w, window_strides=(1, 1), padding="SAME",
        dimension_numbers=("NCHW", "OIHW", "NCHW"))
    y = y + b.reshape(1, -1, 1, 1)
    mean = jnp.mean(y, axis=(0, 2, 3), keepdims=True)
    var = jnp.mean((y - mean) ** 2, axis=(0, 2, 3), keepdims=True)
    y = (y - mean) / jnp.sqrt(var + EPS)
    y = y * gamma.reshape(1, -1, 1, 1) + beta.reshape(1, -1, 1, 1)
    return jnp.maximum(y, 0.0)


if __name__ == "__main__":
    def run_case(N, C_in, C_out, H, W, key):
        k = 3
        kx, kw, kb = jax.random.split(key, 3)
        x = jax.random.normal(kx, (N, C_in, H, W), dtype=jnp.float32)
        bound = 1.0 / (C_in * k * k) ** 0.5
        weight = jax.random.uniform(kw, (C_out, C_in, k, k), jnp.float32, -bound, bound)
        bias = jax.random.uniform(kb, (C_out,), jnp.float32, -bound, bound)
        gamma = jnp.ones((C_out,), jnp.float32)   # BatchNorm2d default weight
        beta = jnp.zeros((C_out,), jnp.float32)   # BatchNorm2d default bias
        # TODO(synk): BatchNorm2d running_mean/running_var momentum updates are a
        # training-time buffer side effect and do not affect this forward output.

        out = jax.jit(single_conv)(x, weight, bias, gamma, beta)
        out = jax.block_until_ready(out)
        ref = ref_single_conv(x, weight, bias, gamma, beta)
        assert out.shape == (N, C_out, H, W), out.shape
        # bf16 MXU inputs + bf16 output stream -> bf16-level tolerance
        err = float(jnp.max(jnp.abs(out - ref)))
        assert jnp.allclose(out, ref, atol=3e-2, rtol=3e-2), err

    key = jax.random.PRNGKey(0)
    k1, k2 = jax.random.split(key)
    run_case(2, 4, 8, 16, 16, k1)    # shallow layer -> recompute path
    run_case(2, 32, 16, 8, 8, k2)    # deeper layer  -> bf16 conv-stash path
    print("KERNEL_OK")
</pallas_src>

<mosaic_0001>
module attributes {stable_mosaic.version = 11 : i64} {
  func.func @_stats_kernel(%arg0: i32, %arg1: i32, %arg2: memref<256x48xbf16, #tpu.memory_space<vmem>>, %arg3: memref<48x128xbf16, #tpu.memory_space<vmem>>, %arg4: memref<8x128xf32, #tpu.memory_space<vmem>>, %arg5: memref<8x128xf32, #tpu.memory_space<vmem>>) attributes {dimension_semantics = [#tpu.dimension_semantics<parallel>, #tpu.dimension_semantics<arbitrary>], iteration_bounds = array<i64: 2, 1>, scalar_prefetch = 0 : i64, scratch_operands = 0 : i64, tpu.core_type = #tpu.core_type<tc>, window_params = [{transform_indices = @transform_0, window_bounds = array<i64: 256, 48>}, {pipeline_mode = #tpu.pipeline_mode<synchronous>, transform_indices = @transform_1, window_bounds = array<i64: 48, 128>}, {transform_indices = @transform_2, window_bounds = array<i64: 8, 128>}, {transform_indices = @transform_3, window_bounds = array<i64: 8, 128>}]} {
    %c0_i32 = arith.constant 0 : i32
    %0 = arith.cmpi eq, %arg1, %c0_i32 : i32
    %1 = arith.extui %0 : i1 to i32
    %c0_i32_0 = arith.constant 0 : i32
    %2 = arith.cmpi ne, %1, %c0_i32_0 : i32
    scf.if %2 {
      %cst_14 = arith.constant 0.000000e+00 : f32
      %19 = vector.broadcast %cst_14 : f32 to vector<8x128xf32>
      %c0_15 = arith.constant 0 : index
      %c0_16 = arith.constant 0 : index
      %20 = vector.load %arg4[%c0_15, %c0_16] : memref<8x128xf32, #tpu.memory_space<vmem>>, vector<8x128xf32>
      tpu.vector_store %arg4[%c0_15, %c0_16], %19 {strides = array<i32>} : memref<8x128xf32, #tpu.memory_space<vmem>>, vector<8x128xf32>,
      %cst_17 = arith.constant 0.000000e+00 : f32
      %21 = vector.broadcast %cst_17 : f32 to vector<8x128xf32>
      %c0_18 = arith.constant 0 : index
      %c0_19 = arith.constant 0 : index
      %22 = vector.load %arg5[%c0_18, %c0_19] : memref<8x128xf32, #tpu.memory_space<vmem>>, vector<8x128xf32>
      tpu.vector_store %arg5[%c0_18, %c0_19], %21 {strides = array<i32>} : memref<8x128xf32, #tpu.memory_space<vmem>>, vector<8x128xf32>,
    } else {
    }
    %c0 = arith.constant 0 : index
    %c0_1 = arith.constant 0 : index
    %3 = vector.load %arg2[%c0, %c0_1] : memref<256x48xbf16, #tpu.memory_space<vmem>>, vector<256x48xbf16>
    %c0_2 = arith.constant 0 : index
    %c0_3 = arith.constant 0 : index
    %4 = vector.load %arg3[%c0_2, %c0_3] : memref<48x128xbf16, #tpu.memory_space<vmem>>, vector<48x128xbf16>
    %cst = arith.constant dense<0.000000e+00> : vector<256x128xf32>
    %5 = tpu.matmul %3, %4, %cst {dimension_numbers = #tpu.dot_dimension_numbers<[1], [0], [0], [1], [0, 0, 1, 1], [], []>} : vector<256x48xbf16>, vector<48x128xbf16>, vector<256x128xf32> -> vector<256x128xf32>
    %c0_4 = arith.constant 0 : index
    %c0_5 = arith.constant 0 : index
    %6 = vector.load %arg4[%c0_4, %c0_5] : memref<8x128xf32, #tpu.memory_space<vmem>>, vector<8x128xf32>
    %cst_6 = arith.constant dense<0.000000e+00> : vector<128xf32>
    %7 = vector.multi_reduction <add>, %5, %cst_6 [0] : vector<256x128xf32> to vector<128xf32>
    %8 = vector.shape_cast %7 : vector<128xf32> to vector<1x128xf32>
    %9 = vector.broadcast %8 : vector<1x128xf32> to vector<8x128xf32>
    %10 = arith.addf %6, %9 : vector<8x128xf32>
    %c0_7 = arith.constant 0 : index
    %c0_8 = arith.constant 0 : index
    %11 = vector.load %arg4[%c0_7, %c0_8] : memref<8x128xf32, #tpu.memory_space<vmem>>, vector<8x128xf32>
    tpu.vector_store %arg4[%c0_7, %c0_8], %10 {strides = array<i32>} : memref<8x128xf32, #tpu.memory_space<vmem>>, vector<8x128xf32>,
    %c0_9 = arith.constant 0 : index
    %c0_10 = arith.constant 0 : index
    %12 = vector.load %arg5[%c0_9, %c0_10] : memref<8x128xf32, #tpu.memory_space<vmem>>, vector<8x128xf32>
    %13 = arith.mulf %5, %5 : vector<256x128xf32>
    %cst_11 = arith.constant dense<0.000000e+00> : vector<128xf32>
    %14 = vector.multi_reduction <add>, %13, %cst_11 [0] : vector<256x128xf32> to vector<128xf32>
    %15 = vector.shape_cast %14 : vector<128xf32> to vector<1x128xf32>
    %16 = vector.broadcast %15 : vector<1x128xf32> to vector<8x128xf32>
    %17 = arith.addf %12, %16 : vector<8x128xf32>
    %c0_12 = arith.constant 0 : index
    %c0_13 = arith.constant 0 : index
    %18 = vector.load %arg5[%c0_12, %c0_13] : memref<8x128xf32, #tpu.memory_space<vmem>>, vector<8x128xf32>
    tpu.vector_store %arg5[%c0_12, %c0_13], %17 {strides = array<i32>} : memref<8x128xf32, #tpu.memory_space<vmem>>, vector<8x128xf32>,
    return
  }
  func.func @transform_0(%arg0: i32, %arg1: i32) -> (i32, i32) {
    %c1_i32 = arith.constant 1 : i32
    %0 = arith.muli %arg0, %c1_i32 : i32
    %1 = arith.addi %0, %arg1 : i32
    %c0_i32 = arith.constant 0 : i32
    %c0_i32_0 = arith.constant 0 : i32
    return %1, %c0_i32 : i32, i32
  }
  func.func @transform_1(%arg0: i32, %arg1: i32) -> (i32, i32) {
    %c0_i32 = arith.constant 0 : i32
    %c0_i32_0 = arith.constant 0 : i32
    %c0_i32_1 = arith.constant 0 : i32
    return %c0_i32, %c0_i32_0 : i32, i32
  }
  func.func @transform_2(%arg0: i32, %arg1: i32) -> (i32, i32) {
    %c0_i32 = arith.constant 0 : i32
    %c0_i32_0 = arith.constant 0 : i32
    return %arg0, %c0_i32 : i32, i32
  }
  func.func @transform_3(%arg0: i32, %arg1: i32) -> (i32, i32) {
    %c0_i32 = arith.constant 0 : i32
    %c0_i32_0 = arith.constant 0 : i32
    return %arg0, %c0_i32 : i32, i32
  }
}

module attributes {stable_mosaic.version = 11 : i64} {
  func.func @_apply_recompute_kernel(%arg0: i32, %arg1: memref<256x48xbf16, #tpu.memory_space<vmem>>, %arg2: memref<48x128xbf16, #tpu.memory_space<vmem>>, %arg3: memref<1x128xf32, #tpu.memory_space<vmem>>, %arg4: memref<1x128xf32, #tpu.memory_space<vmem>>, %arg5: memref<256x128xbf16, #tpu.memory_space<vmem>>) attributes {dimension_semantics = [#tpu.dimension_semantics<parallel>], iteration_bounds = array<i64: 2>, scalar_prefetch = 0 : i64, scratch_operands = 0 : i64, tpu.core_type = #tpu.core_type<tc>, window_params = [{transform_indices = @transform_0, window_bounds = array<i64: 256, 48>}, {pipeline_mode = #tpu.pipeline_mode<synchronous>, transform_indices = @transform_1, window_bounds = array<i64: 48, 128>}, {pipeline_mode = #tpu.pipeline_mode<synchronous>, transform_indices = @transform_2, window_bounds = array<i64: 1, 128>}, {pipeline_mode = #tpu.pipeline_mode<synchronous>, transform_indices = @transform_3, window_bounds = array<i64: 1, 128>}, {transform_indices = @transform_4, window_bounds = array<i64: 256, 128>}]} {
    %c0 = arith.constant 0 : index
    %c0_0 = arith.constant 0 : index
    %0 = vector.load %arg1[%c0, %c0_0] : memref<256x48xbf16, #tpu.memory_space<vmem>>, vector<256x48xbf16>
    %c0_1 = arith.constant 0 : index
    %c0_2 = arith.constant 0 : index
    %1 = vector.load %arg2[%c0_1, %c0_2] : memref<48x128xbf16, #tpu.memory_space<vmem>>, vector<48x128xbf16>
    %cst = arith.constant dense<0.000000e+00> : vector<256x128xf32>
    %2 = tpu.matmul %0, %1, %cst {dimension_numbers = #tpu.dot_dimension_numbers<[1], [0], [0], [1], [0, 0, 1, 1], [], []>} : vector<256x48xbf16>, vector<48x128xbf16>, vector<256x128xf32> -> vector<256x128xf32>
    %c0_3 = arith.constant 0 : index
    %c0_4 = arith.constant 0 : index
    %3 = vector.load %arg3[%c0_3, %c0_4] : memref<1x128xf32, #tpu.memory_space<vmem>>, vector<1x128xf32>
    %4 = vector.broadcast %3 : vector<1x128xf32> to vector<256x128xf32>
    %5 = arith.mulf %2, %4 : vector<256x128xf32>
    %c0_5 = arith.constant 0 : index
    %c0_6 = arith.constant 0 : index
    %6 = vector.load %arg4[%c0_5, %c0_6] : memref<1x128xf32, #tpu.memory_space<vmem>>, vector<1x128xf32>
    %7 = vector.broadcast %6 : vector<1x128xf32> to vector<256x128xf32>
    %8 = arith.addf %5, %7 : vector<256x128xf32>
    %cst_7 = arith.constant 0.000000e+00 : f32
    %9 = vector.broadcast %cst_7 : f32 to vector<256x128xf32>
    %10 = arith.maximumf %8, %9 : vector<256x128xf32>
    %11 = arith.truncf %10 : vector<256x128xf32> to vector<256x128xbf16>
    %c0_8 = arith.constant 0 : index
    %c0_9 = arith.constant 0 : index
    %12 = vector.load %arg5[%c0_8, %c0_9] : memref<256x128xbf16, #tpu.memory_space<vmem>>, vector<256x128xbf16>
    tpu.vector_store %arg5[%c0_8, %c0_9], %11 {strides = array<i32>} : memref<256x128xbf16, #tpu.memory_space<vmem>>, vector<256x128xbf16>,
    return
  }
  func.func @transform_0(%arg0: i32) -> (i32, i32) {
    %c0_i32 = arith.constant 0 : i32
    %c0_i32_0 = arith.constant 0 : i32
    return %arg0, %c0_i32 : i32, i32
  }
  func.func @transform_1(%arg0: i32) -> (i32, i32) {
    %c0_i32 = arith.constant 0 : i32
    %c0_i32_0 = arith.constant 0 : i32
    %c0_i32_1 = arith.constant 0 : i32
    return %c0_i32, %c0_i32_0 : i32, i32
  }
  func.func @transform_2(%arg0: i32) -> (i32, i32) {
    %c0_i32 = arith.constant 0 : i32
    %c0_i32_0 = arith.constant 0 : i32
    %c0_i32_1 = arith.constant 0 : i32
    return %c0_i32, %c0_i32_0 : i32, i32
  }
  func.func @transform_3(%arg0: i32) -> (i32, i32) {
    %c0_i32 = arith.constant 0 : i32
    %c0_i32_0 = arith.constant 0 : i32
    %c0_i32_1 = arith.constant 0 : i32
    return %c0_i32, %c0_i32_0 : i32, i32
  }
  func.func @transform_4(%arg0: i32) -> (i32, i32) {
    %c0_i32 = arith.constant 0 : i32
    %c0_i32_0 = arith.constant 0 : i32
    return %arg0, %c0_i32 : i32, i32
  }
}

</mosaic_0001>

<llo_original>
// kernel: single_conv.2
$region0: #{single_conv.2}
  #allocation0 [shape = 'u32[]', space=smem, size = 0x4, offset = 0x4, fixed_abs, tag = 'smem constant byte address 0x4 - core index']
  #allocation1 [shape = 'u32[144,128]{1,0:T(1,128)}', space=vmem, size = 0x12000, scoped, tag = 'internal scratch']
  %s0 = inlined_call_operand.vmem [shape: bf16[512,48], index: 0, kind: input, shape index: {}]
  %s1 = inlined_call_operand.vmem [shape: bf16[48,128], index: 1, kind: input, shape index: {}]
  %s2 = inlined_call_operand.vmem [shape: f32[16,128], index: 2, kind: output, shape index: {0}]
  %s3 = inlined_call_operand.vmem [shape: f32[16,128], index: 3, kind: output, shape index: {1}]
  %4 = xla_tuple %s2, %s3
  %s5 = sld [smem:[#allocation0]]
  $region53: #{single_conv.2} parent=0
    _
  %s7 = ssub.s32 1, %s5
  %s8 = scalar_select 0, %s7, %s5
  loop: start=0, step=1, limit=4
  $region2: #{single_conv.2} parent=0 // loop_pre_header
    _
  $region3: #{single_conv.2} parent=0 // loop_header
    %s10 = sphi 0, %s14
    %p11 = scmp.ge.s32.totalorder %s10, 4
    %s17 = sphi 0, %s29
    %s18 = sphi 0, %s25
    %s19 = sphi 0, %s17
    %s20 = sphi 0, %s18
    %s21 = sphi 0, %s19
    %s22 = sphi 0, %s20
    %s34 = sphi 0, %s36
    %s37 = sphi 0, %s34
    %s38 = sphi 0, %s37
    %s54 = sphi 0, %s38
    %s58 = sphi 0, %s58
    %s60 = sphi 0, %s58
    %s61 = sphi 0, %s60
    %s75 = sphi 0, %s61
    %s81 = sphi 0, %s83
    %s84 = sphi 0, %s81
    %s85 = sphi 0, %s84
    %s101 = sphi 0, %s85
    %s107 = sphi 0, %s109
    %s110 = sphi 0, %s107
    %s111 = sphi 0, %s110
    %s127 = sphi 0, %s111
  $region4: #{single_conv.2} parent=0 // loop_header_branch
    %13 = sbr.rel (%p11) target = $region8
  $region5: #{single_conv.2} parent=0 // loop_body
    %s15 = ssub.s32 %s10, 1
    %s16 = ssub.s32 %s10, 2
    %s23 = sadd.s32 1, %s18
    %p24 = scmp.ge.s32.totalorder %s23, 1
    %s25 = scalar_select %p24, 0, %s23
    %s26 = sadd.s32 1, %s17
    %s27 = scalar_select %p24, %s26, %s17
    %p28 = scmp.ge.s32.totalorder %s27, 2
    %s29 = scalar_select %p28, 0, %s27
    %s30 = sadd.s32 %s17, %s18
    %s31 = sadd.s32 %s29, %s25
    %s32 = ssub.s32 %s30, %s31
    %p33 = scmp.eq.s32.totalorder %s32, 0
    %s35 = sadd.s32 %s34, 1
    %s36 = scalar_select %p33, %s34, %s35
    %p39 = pneg %p33
    %p40 = scmp.eq.s32.totalorder %s10, 1
    %p41 = por %p39, %p40
    %p42 = scmp.ne.s32.totalorder %s34, %s37
    %p43 = scmp.eq.s32.totalorder %s10, 0
    %p44 = por %p42, %p43
    %p45 = scmp.ne.s32.totalorder %s34, %s37
    %p46 = scmp.eq.s32.totalorder %s15, 1
    %p47 = por %p45, %p46
    %p48 = scmp.ne.s32.totalorder %s37, %s38
    %p49 = scmp.eq.s32.totalorder %s15, 0
    %p50 = por %p48, %p49
    %p51 = scmp.ne.s32.totalorder %s37, %s38
    %p52 = scmp.eq.s32.totalorder %s16, 1
    %p53 = por %p51, %p52
    %p55 = scmp.ne.s32.totalorder %s38, %s54
    %p56 = scmp.eq.s32.totalorder %s16, 0
    %p57 = por %p55, %p56
    %s59 = sadd.s32 %s58, 1
    %p62 = scmp.eq.s32.totalorder %s10, 1
    %p63 = scmp.ne.s32.totalorder %s58, %s60
    %p64 = scmp.eq.s32.totalorder %s10, 0
    %p65 = por %p63, %p64
    %p66 = scmp.ne.s32.totalorder %s58, %s60
    %p67 = scmp.eq.s32.totalorder %s15, 1
    %p68 = por %p66, %p67
    %p69 = scmp.ne.s32.totalorder %s60, %s61
    %p70 = scmp.eq.s32.totalorder %s15, 0
    %p71 = por %p69, %p70
    %p72 = scmp.ne.s32.totalorder %s60, %s61
    %p73 = scmp.eq.s32.totalorder %s16, 1
    %p74 = por %p72, %p73
    %p76 = scmp.ne.s32.totalorder %s61, %s75
    %p77 = scmp.eq.s32.totalorder %s16, 0
    %p78 = por %p76, %p77
    %s79 = ssub.s32 %s17, %s29
    %p80 = scmp.eq.s32.totalorder %s79, 0
    %s82 = sadd.s32 %s81, 1
    %s83 = scalar_select %p80, %s81, %s82
    %p86 = pneg %p80
    %p87 = scmp.eq.s32.totalorder %s10, 1
    %p88 = por %p86, %p87
    %p89 = scmp.ne.s32.totalorder %s81, %s84
    %p90 = scmp.eq.s32.totalorder %s10, 0
    %p91 = por %p89, %p90
    %p92 = scmp.ne.s32.totalorder %s81, %s84
    %p93 = scmp.eq.s32.totalorder %s15, 1
    %p94 = por %p92, %p93
    %p95 = scmp.ne.s32.totalorder %s84, %s85
    %p96 = scmp.eq.s32.totalorder %s15, 0
    %p97 = por %p95, %p96
    %p98 = scmp.ne.s32.totalorder %s84, %s85
    %p99 = scmp.eq.s32.totalorder %s16, 1
    %p100 = por %p98, %p99
    %p102 = scmp.ne.s32.totalorder %s85, %s101
    %p103 = scmp.eq.s32.totalorder %s16, 0
    %p104 = por %p102, %p103
    %s105 = ssub.s32 %s17, %s29
    %p106 = scmp.eq.s32.totalorder %s105, 0
    %s108 = sadd.s32 %s107, 1
    %s109 = scalar_select %p106, %s107, %s108
    %p112 = pneg %p106
    %p113 = scmp.eq.s32.totalorder %s10, 1
    %p114 = por %p112, %p113
    %p115 = scmp.ne.s32.totalorder %s107, %s110
    %p116 = scmp.eq.s32.totalorder %s10, 0
    %p117 = por %p115, %p116
    %p118 = scmp.ne.s32.totalorder %s107, %s110
    %p119 = scmp.eq.s32.totalorder %s15, 1
    %p120 = por %p118, %p119
    %p121 = scmp.ne.s32.totalorder %s110, %s111
    %p122 = scmp.eq.s32.totalorder %s15, 0
    %p123 = por %p121, %p122
    %p124 = scmp.ne.s32.totalorder %s110, %s111
    %p125 = scmp.eq.s32.totalorder %s16, 1
    %p126 = por %p124, %p125
    %p128 = scmp.ne.s32.totalorder %s111, %s127
    %p129 = scmp.eq.s32.totalorder %s16, 0
    %p130 = por %p128, %p129
    %p131 = scmp.le.s32.totalorder 1, %s10
    %p132 = scmp.lt.s32.totalorder %s10, 3
    %p133 = pnand %p131, %p132
    %p134 = pneg %p133
    // Predicated region
    $region9: #{single_conv.2} parent=5 // pred_check
      _
    $region10: #{single_conv.2} parent=5 // pred_check_branch
      %136 = sbr.rel (%p133) target = $region12
    $region11: #{single_conv.2} parent=5 // pred_region
      %s137 = ssub.s32 %s10, 1
      // Predicated region
      $region13: #{single_conv.2} parent=11 // pred_check
        %p138 = pneg %p71
      $region14: #{single_conv.2} parent=11 // pred_check_branch
        %140 = sbr.rel (%p138) target = $region16
      $region15: #{single_conv.2} parent=11 // pred_region
        _
      $region16: #{single_conv.2} parent=11 // pred_fallthru
        _
    $region12: #{single_conv.2} parent=5 // pred_fallthru
      _
    %p141 = scmp.lt.s32.totalorder %s10, 2
    // Predicated region
    $region17: #{single_conv.2} parent=5 // pred_check
      %p142 = pneg %p141
    $region18: #{single_conv.2} parent=5 // pred_check_branch
      %144 = sbr.rel (%p142) target = $region20
    $region19: #{single_conv.2} parent=5 // pred_region
      // Predicated region
      $region21: #{single_conv.2} parent=19 // pred_check
        %p145 = pneg %p44
      $region22: #{single_conv.2} parent=19 // pred_check_branch
        %147 = sbr.rel (%p145) target = $region24
      $region23: #{single_conv.2} parent=19 // pred_region
        %s148 = sadd.s32 %s17, %s18
        %s149 = smul.u32 32, %s148
        %p150 = scmp.lt.s32.totalorder %s149, 63
        %s151 = scalar_select %p150, %s149, 63
        %s152 = smul.addr %s151, 4
        %s153 = scalar_lea.vmem %s0, %s152
        %s154 = sadd.s32 %s17, %s18
        %s155 = smul.u32 32, %s154
      $region24: #{single_conv.2} parent=19 // pred_fallthru
        _
    $region20: #{single_conv.2} parent=5 // pred_fallthru
      _
    %p156 = scmp.le.s32.totalorder 1, %s10
    %p157 = scmp.lt.s32.totalorder %s10, 3
    %p158 = pnand %p156, %p157
    %p159 = pneg %p158
    // Predicated region
    $region25: #{single_conv.2} parent=5 // pred_check
      _
    $region26: #{single_conv.2} parent=5 // pred_check_branch
      %161 = sbr.rel (%p158) target = $region28
    $region27: #{single_conv.2} parent=5 // pred_region
      %s162 = ssub.s32 %s10, 1
      %s163 = sadd.s32 %s19, %s20
      %s164 = smul.u32 32, %s163
      %p165 = scmp.lt.s32.totalorder %s164, 63
      %s166 = scalar_select %p165, %s164, 63
      %s167 = smul.addr %s166, 4
      %s168 = scalar_lea.vmem %s0, %s167
      %p169 = pneg %p50
      %p170 = pneg %p47
      %p171 = pneg %p71
      %p172 = pneg %p68
      %p173 = pneg %p97
      %p174 = pneg %p94
      %p175 = scmp.lt.s32.totalorder %s19, 1
      %s176 = scalar_select %p175, %s19, 1
      %s177 = smul.addr %s176, 8
      %s178 = scalar_lea.vmem %s2, %s177
      %p179 = pneg %p123
      %p180 = pneg %p120
      %p181 = scmp.lt.s32.totalorder %s19, 1
      %s182 = scalar_select %p181, %s19, 1
      %s183 = smul.addr %s182, 8
      %s184 = scalar_lea.vmem %s3, %s183
      %s185 = sadd.s32 %s19, %s20
      %s186 = smul.u32 32, %s185
      %p187 = scmp.lt.s32.totalorder %s186, 63
      %s188 = scalar_select %p187, %s186, 63
      %s189 = smul.addr %s188, 4
      %s190 = scalar_lea.vmem %s0, %s189
      %s191 = sadd.s32 %s19, %s20
      %s192 = smul.u32 32, %s191
      %p193 = scmp.lt.s32.totalorder %s19, 1
      %s194 = scalar_select %p193, %s19, 1
      %s195 = smul.addr %s194, 8
      %s196 = scalar_lea.vmem %s2, %s195
      %p197 = scmp.lt.s32.totalorder %s19, 1
      %s198 = scalar_select %p197, %s19, 1
      %s199 = smul.addr %s198, 8
      %s200 = scalar_lea.vmem %s3, %s199
      %p202 = scmp.eq.s32.totalorder %s20, 0
      // Predicated region
      $region29: #{single_conv.2} parent=27 // pred_check
        %p203 = pneg %p202
      $region30: #{single_conv.2} parent=27 // pred_check_branch
        %205 = sbr.rel (%p203) target = $region32
      $region31: #{single_conv.2} parent=27 // pred_region
        %206 = vst [vmem:[%s196] sm:$0xff] 0.0
        %207 = vst [vmem:[%s200] sm:$0xff] 0.0
      $region32: #{single_conv.2} parent=27 // pred_fallthru
        _
      %v208 = vld [vmem:[%s190] sm:$0xf]
      %v209 = vld [vmem:[%s190 + $0x4] sm:$0xf]
      %v210 = vld [vmem:[%s190 + $0x8] sm:$0xf]
      %v211 = vld [vmem:[%s190 + $0xc] sm:$0xf]
      %v212 = vld [vmem:[%s190 + $0x10] sm:$0xf]
      %v213 = vld [vmem:[%s190 + $0x14] sm:$0xf]
      %v214 = vld [vmem:[%s190 + $0x18] sm:$0xf]
      %v215 = vld [vmem:[%s190 + $0x1c] sm:$0xf]
      %v216 = vld [vmem:[%s190 + $0x20] sm:$0xf]
      %v217 = vld [vmem:[%s190 + $0x24] sm:$0xf]
      %v218 = vld [vmem:[%s190 + $0x28] sm:$0xf]
      %v219 = vld [vmem:[%s190 + $0x2c] sm:$0xf]
      %v220 = vld [vmem:[%s190 + $0x30] sm:$0xf]
      %v221 = vld [vmem:[%s190 + $0x34] sm:$0xf]
      %v222 = vld [vmem:[%s190 + $0x38] sm:$0xf]
      %v223 = vld [vmem:[%s190 + $0x3c] sm:$0xf]
      %v224 = vld [vmem:[%s190 + $0x40] sm:$0xf]
      %v225 = vld [vmem:[%s190 + $0x44] sm:$0xf]
      %v226 = vld [vmem:[%s190 + $0x48] sm:$0xf]
      %v227 = vld [vmem:[%s190 + $0x4c] sm:$0xf]
      %v228 = vld [vmem:[%s190 + $0x50] sm:$0xf]
      %v229 = vld [vmem:[%s190 + $0x54] sm:$0xf]
      %v230 = vld [vmem:[%s190 + $0x58] sm:$0xf]
      %v231 = vld [vmem:[%s190 + $0x5c] sm:$0xf]
      %v232 = vld [vmem:[%s190 + $0x60] sm:$0xf]
      %v233 = vld [vmem:[%s190 + $0x64] sm:$0xf]
      %v234 = vld [vmem:[%s190 + $0x68] sm:$0xf]
      %v235 = vld [vmem:[%s190 + $0x6c] sm:$0xf]
      %v236 = vld [vmem:[%s190 + $0x70] sm:$0xf]
      %v237 = vld [vmem:[%s190 + $0x74] sm:$0xf]
      %v238 = vld [vmem:[%s190 + $0x78] sm:$0xf]
      %v239 = vld [vmem:[%s190 + $0x7c] sm:$0xf]
      %v240 = vld [vmem:[%s1] sm:$0xf]
      %v241 = vld [vmem:[%s1 + $0x4] sm:$0xf]
      %v242 = vld [vmem:[%s1 + $0x8] sm:$0xf]
      %v243 = vld [vmem:[%s1 + $0xc] sm:$0xf]
      %v244 = vld [vmem:[%s1 + $0x10] sm:$0xf]
      %v245 = vld [vmem:[%s1 + $0x14] sm:$0xf]
      %v278 = vunpack.c.l.b16 %v208
      %v279 = vunpack.c.l.b16 %v209
      %v280 = vunpack.c.l.b16 %v210
      %v281 = vunpack.c.l.b16 %v211
      %v282 = vunpack.c.l.b16 %v212
      %v283 = vunpack.c.l.b16 %v213
      %v284 = vunpack.c.l.b16 %v214
      %v285 = vunpack.c.l.b16 %v215
      %v286 = vunpack.c.l.b16 %v216
      %v287 = vunpack.c.l.b16 %v217
      %v288 = vunpack.c.l.b16 %v218
      %v289 = vunpack.c.l.b16 %v219
      %v290 = vunpack.c.l.b16 %v220
      %v291 = vunpack.c.l.b16 %v221
      %v292 = vunpack.c.l.b16 %v222
      %v293 = vunpack.c.l.b16 %v223
      %v294 = vunpack.c.l.b16 %v224
      %v295 = vunpack.c.l.b16 %v225
      %v296 = vunpack.c.l.b16 %v226
      %v297 = vunpack.c.l.b16 %v227
      %v298 = vunpack.c.l.b16 %v228
      %v299 = vunpack.c.l.b16 %v229
      %v300 = vunpack.c.l.b16 %v230
      %v301 = vunpack.c.l.b16 %v231
      %v302 = vunpack.c.l.b16 %v232
      %v303 = vunpack.c.l.b16 %v233
      %v304 = vunpack.c.l.b16 %v234
      %v305 = vunpack.c.l.b16 %v235
      %v306 = vunpack.c.l.b16 %v236
      %v307 = vunpack.c.l.b16 %v237
      %v308 = vunpack.c.l.b16 %v238
      %v309 = vunpack.c.l.b16 %v239
      %v310 = vpack.c.b16 %v279, %v278
      %v311 = vpack.c.b16 %v281, %v280
      %v312 = vpack.c.b16 %v283, %v282
      %v313 = vpack.c.b16 %v285, %v284
      %v314 = vpack.c.b16 %v287, %v286
      %v315 = vpack.c.b16 %v289, %v288
      %v316 = vpack.c.b16 %v291, %v290
      %v317 = vpack.c.b16 %v293, %v292
      %v318 = vpack.c.b16 %v295, %v294
      %v319 = vpack.c.b16 %v297, %v296
      %v320 = vpack.c.b16 %v299, %v298
      %v321 = vpack.c.b16 %v301, %v300
      %v322 = vpack.c.b16 %v303, %v302
      %v323 = vpack.c.b16 %v305, %v304
      %v324 = vpack.c.b16 %v307, %v306
      %v325 = vpack.c.b16 %v309, %v308
      %v332 = vunpack.c.l.b16 %v240
      %v333 = vunpack.c.l.b16 %v241
      %v334 = vunpack.c.l.b16 %v242
      %v335 = vunpack.c.l.b16 %v243
      %v336 = vunpack.c.l.b16 %v244
      %v337 = vunpack.c.l.b16 %v245
      %v338 = vpack.c.b16 %v333, %v332
      %v339 = vpack.c.b16 %v335, %v334
      %v340 = vpack.c.b16 %v337, %v336
      %vm344 = vcmask 392192
      %v346 = vsel %vm344, %v310, 0
      %v349 = vsel %vm344, %v311, 0
      %v352 = vsel %vm344, %v312, 0
      %v355 = vsel %vm344, %v313, 0
      %v358 = vsel %vm344, %v314, 0
      %v361 = vsel %vm344, %v315, 0
      %v364 = vsel %vm344, %v316, 0
      %v367 = vsel %vm344, %v317, 0
      %v370 = vsel %vm344, %v318, 0
      %v373 = vsel %vm344, %v319, 0
      %v376 = vsel %vm344, %v320, 0
      %v379 = vsel %vm344, %v321, 0
      %v382 = vsel %vm344, %v322, 0
      %v385 = vsel %vm344, %v323, 0
      %v388 = vsel %vm344, %v324, 0
      %v391 = vsel %vm344, %v325, 0
      %393 = vmatprep.subr.bf16.mxu0 0
      %394 = vmatpush1.bf16.msra.mxu0 0
      %395 = vmatprep.subr.bf16.mxu0 0
      %396 = vmatpush1.bf16.msra.mxu0 0
      %397 = vmatprep.subr.bf16.mxu0 0
      %398 = vmatpush1.bf16.msra.mxu0 0
      %399 = vmatprep.subr.bf16.mxu0 0
      %400 = vmatpush1.bf16.msra.mxu0 0
      %401 = vmatprep.subr.bf16.mxu0 0
      %402 = vmatpush1.bf16.msra.mxu0 0
      %403 = vmatprep.subr.bf16.mxu0 0
      %404 = vmatpush1.bf16.msra.mxu0 %v340
      %405 = vmatprep.subr.bf16.mxu0 0
      %406 = vmatpush1.bf16.msra.mxu0 %v339
      %407 = vmatprep.subr.bf16.mxu0 0
      %408 = vmatpush1.bf16.msra.mxu0 %v338
      %409 = vmatprep.subr.bf16.mxu0 0
      %410 = vmatpush2.bf16.msra.mxu0 0
      %411 = vmatprep.subr.bf16.mxu0 0
      %412 = vmatpush2.bf16.msra.mxu0 0
      %413 = vmatprep.subr.bf16.mxu0 0
      %414 = vmatpush2.bf16.msra.mxu0 0
      %415 = vmatprep.subr.bf16.mxu0 0
      %416 = vmatpush2.bf16.msra.mxu0 0
      %417 = vmatprep.subr.bf16.mxu0 0
      %418 = vmatpush2.bf16.msra.mxu0 0
      %419 = vmatprep.subr.bf16.mxu0 0
      %420 = vmatpush2.bf16.msra.mxu0 0
      %421 = vmatprep.subr.bf16.mxu0 0
      %422 = vmatpush2.bf16.msra.mxu0 0
      %423 = vmatprep.subr.bf16.mxu0 0
      %424 = vmatpush2.bf16.msra.mxu0 0
      %425 = vmatprep.mubr.bf16.mxu0 0
      %426 = vmatmul.mubr.bf16.gmra.mxu0 %v346
      %v427 = vpop.f32.mrf.mxu0
      %v428 = vadd.f32 0.0, %v427
      %v429 = vpop.f32.mrf.mxu0
      %v430 = vpop.f32.mrf.mxu0
      %v431 = vadd.f32 0.0, %v430
      %v432 = vpop.f32.mrf.mxu0
      %433 = vmatprep.mubr.bf16.mxu0 0
      %434 = vmatmul.mubr.bf16.gmra.mxu0 %v349
      %v435 = vpop.f32.mrf.mxu0
      %v436 = vadd.f32 0.0, %v435
      %v437 = vpop.f32.mrf.mxu0
      %v438 = vpop.f32.mrf.mxu0
      %v439 = vadd.f32 0.0, %v438
      %v440 = vpop.f32.mrf.mxu0
      %441 = vmatprep.mubr.bf16.mxu0 0
      %442 = vmatmul.mubr.bf16.gmra.mxu0 %v352
      %v443 = vpop.f32.mrf.mxu0
      %v444 = vadd.f32 0.0, %v443
      %v445 = vpop.f32.mrf.mxu0
      %v446 = vpop.f32.mrf.mxu0
      %v447 = vadd.f32 0.0, %v446
      %v448 = vpop.f32.mrf.mxu0
      %449 = vmatprep.mubr.bf16.mxu0 0
      %450 = vmatmul.mubr.bf16.gmra.mxu0 %v355
      %v451 = vpop.f32.mrf.mxu0
      %v452 = vadd.f32 0.0, %v451
      %v453 = vpop.f32.mrf.mxu0
      %v454 = vpop.f32.mrf.mxu0
      %v455 = vadd.f32 0.0, %v454
      %v456 = vpop.f32.mrf.mxu0
      %457 = vmatprep.mubr.bf16.mxu0 0
      %458 = vmatmul.mubr.bf16.gmra.mxu0 %v358
      %v459 = vpop.f32.mrf.mxu0
      %v460 = vadd.f32 0.0, %v459
      %v461 = vpop.f32.mrf.mxu0
      %v462 = vpop.f32.mrf.mxu0
      %v463 = vadd.f32 0.0, %v462
      %v464 = vpop.f32.mrf.mxu0
      %465 = vmatprep.mubr.bf16.mxu0 0
      %466 = vmatmul.mubr.bf16.gmra.mxu0 %v361
      %v467 = vpop.f32.mrf.mxu0
      %v468 = vadd.f32 0.0, %v467
      %v469 = vpop.f32.mrf.mxu0
      %v470 = vpop.f32.mrf.mxu0
      %v471 = vadd.f32 0.0, %v470
      %v472 = vpop.f32.mrf.mxu0
      %473 = vmatprep.mubr.bf16.mxu0 0
      %474 = vmatmul.mubr.bf16.gmra.mxu0 %v364
      %v475 = vpop.f32.mrf.mxu0
      %v476 = vadd.f32 0.0, %v475
      %v477 = vpop.f32.mrf.mxu0
      %v478 = vpop.f32.mrf.mxu0
      %v479 = vadd.f32 0.0, %v478
      %v480 = vpop.f32.mrf.mxu0
      %481 = vmatprep.mubr.bf16.mxu0 0
      %482 = vmatmul.mubr.bf16.gmra.mxu0 %v367
      %v483 = vpop.f32.mrf.mxu0
      %v484 = vadd.f32 0.0, %v483
      %v485 = vpop.f32.mrf.mxu0
      %v486 = vpop.f32.mrf.mxu0
      %v487 = vadd.f32 0.0, %v486
      %v488 = vpop.f32.mrf.mxu0
      %489 = vmatprep.mubr.bf16.mxu0 0
      %490 = vmatmul.mubr.bf16.gmra.mxu0 %v370
      %v491 = vpop.f32.mrf.mxu0
      %v492 = vadd.f32 0.0, %v491
      %v493 = vpop.f32.mrf.mxu0
      %v494 = vpop.f32.mrf.mxu0
      %v495 = vadd.f32 0.0, %v494
      %v496 = vpop.f32.mrf.mxu0
      %497 = vmatprep.mubr.bf16.mxu0 0
      %498 = vmatmul.mubr.bf16.gmra.mxu0 %v373
      %v499 = vpop.f32.mrf.mxu0
      %v500 = vadd.f32 0.0, %v499
      %v501 = vpop.f32.mrf.mxu0
      %v502 = vpop.f32.mrf.mxu0
      %v503 = vadd.f32 0.0, %v502
      %v504 = vpop.f32.mrf.mxu0
      %505 = vmatprep.mubr.bf16.mxu0 0
      %506 = vmatmul.mubr.bf16.gmra.mxu0 %v376
      %v507 = vpop.f32.mrf.mxu0
      %v508 = vadd.f32 0.0, %v507
      %v509 = vpop.f32.mrf.mxu0
      %v510 = vpop.f32.mrf.mxu0
      %v511 = vadd.f32 0.0, %v510
      %v512 = vpop.f32.mrf.mxu0
      %513 = vmatprep.mubr.bf16.mxu0 0
      %514 = vmatmul.mubr.bf16.gmra.mxu0 %v379
      %v515 = vpop.f32.mrf.mxu0
      %v516 = vadd.f32 0.0, %v515
      %v517 = vpop.f32.mrf.mxu0
      %v518 = vpop.f32.mrf.mxu0
      %v519 = vadd.f32 0.0, %v518
      %v520 = vpop.f32.mrf.mxu0
      %521 = vmatprep.mubr.bf16.mxu0 0
      %522 = vmatmul.mubr.bf16.gmra.mxu0 %v382
      %v523 = vpop.f32.mrf.mxu0
      %v524 = vadd.f32 0.0, %v523
      %v525 = vpop.f32.mrf.mxu0
      %v526 = vpop.f32.mrf.mxu0
      %v527 = vadd.f32 0.0, %v526
      %v528 = vpop.f32.mrf.mxu0
      %529 = vmatprep.mubr.bf16.mxu0 0
      %530 = vmatmul.mubr.bf16.gmra.mxu0 %v385
      %v531 = vpop.f32.mrf.mxu0
      %v532 = vadd.f32 0.0, %v531
      %v533 = vpop.f32.mrf.mxu0
      %v534 = vpop.f32.mrf.mxu0
      %v535 = vadd.f32 0.0, %v534
      %v536 = vpop.f32.mrf.mxu0
      %537 = vmatprep.mubr.bf16.mxu0 0
      %538 = vmatmul.mubr.bf16.gmra.mxu0 %v388
      %v539 = vpop.f32.mrf.mxu0
      %v540 = vadd.f32 0.0, %v539
      %v541 = vpop.f32.mrf.mxu0
      %v542 = vpop.f32.mrf.mxu0
      %v543 = vadd.f32 0.0, %v542
      %v544 = vpop.f32.mrf.mxu0
      %545 = vmatprep.mubr.bf16.mxu0 0
      %546 = vmatmul.mubr.bf16.gmra.mxu0 %v391
      %v547 = vpop.f32.mrf.mxu0
      %v548 = vadd.f32 0.0, %v547
      %v549 = vpop.f32.mrf.mxu0
      %v550 = vpop.f32.mrf.mxu0
      %v551 = vadd.f32 0.0, %v550
      %v552 = vpop.f32.mrf.mxu0
      %553 = vdwg.mxu0
      %v554 = vld [vmem:[%s196] sm:$0xff]
      %v555 = vadd.f32 %v428, %v431
      %v556 = vadd.f32 %v555, %v436
      %v557 = vadd.f32 %v556, %v439
      %v558 = vadd.f32 %v557, %v444
      %v559 = vadd.f32 %v558, %v447
      %v560 = vadd.f32 %v559, %v452
      %v561 = vadd.f32 %v560, %v455
      %v562 = vadd.f32 %v561, %v460
      %v563 = vadd.f32 %v562, %v463
      %v564 = vadd.f32 %v563, %v468
      %v565 = vadd.f32 %v564, %v471
      %v566 = vadd.f32 %v565, %v476
      %v567 = vadd.f32 %v566, %v479
      %v568 = vadd.f32 %v567, %v484
      %v569 = vadd.f32 %v568, %v487
      %v570 = vadd.f32 %v569, %v492
      %v571 = vadd.f32 %v570, %v495
      %v572 = vadd.f32 %v571, %v500
      %v573 = vadd.f32 %v572, %v503
      %v574 = vadd.f32 %v573, %v508
      %v575 = vadd.f32 %v574, %v511
      %v576 = vadd.f32 %v575, %v516
      %v577 = vadd.f32 %v576, %v519
      %v578 = vadd.f32 %v577, %v524
      %v579 = vadd.f32 %v578, %v527
      %v580 = vadd.f32 %v579, %v532
      %v581 = vadd.f32 %v580, %v535
      %v582 = vadd.f32 %v581, %v540
      %v583 = vadd.f32 %v582, %v543
      %v584 = vadd.f32 %v583, %v548
      %v585 = vadd.f32 %v584, %v551
      %v586 = vrot.slane %v585, 4
      %v587 = vadd.f32 %v585, %v586
      %v588 = vrot.slane %v587, 2
      %v589 = vadd.f32 %v587, %v588
      %v590 = vrot.slane %v589, 1
      %v591 = vadd.f32 %v589, %v590
      %v592 = vadd.f32 %v554, %v591
      %593 = vst [vmem:[%s196] sm:$0xff] %v592
      %v594 = vld [vmem:[%s200] sm:$0xff]
      %v595 = vmul.f32 %v428, %v428
      %v596 = vmul.f32 %v431, %v431
      %v597 = vmul.f32 %v436, %v436
      %v598 = vmul.f32 %v439, %v439
      %v599 = vmul.f32 %v444, %v444
      %v600 = vmul.f32 %v447, %v447
      %v601 = vmul.f32 %v452, %v452
      %v602 = vmul.f32 %v455, %v455
      %v603 = vmul.f32 %v460, %v460
      %v604 = vmul.f32 %v463, %v463
      %v605 = vmul.f32 %v468, %v468
      %v606 = vmul.f32 %v471, %v471
      %v607 = vmul.f32 %v476, %v476
      %v608 = vmul.f32 %v479, %v479
      %v609 = vmul.f32 %v484, %v484
      %v610 = vmul.f32 %v487, %v487
      %v611 = vmul.f32 %v492, %v492
      %v612 = vmul.f32 %v495, %v495
      %v613 = vmul.f32 %v500, %v500
      %v614 = vmul.f32 %v503, %v503
      %v615 = vmul.f32 %v508, %v508
      %v616 = vmul.f32 %v511, %v511
      %v617 = vmul.f32 %v516, %v516
      %v618 = vmul.f32 %v519, %v519
      %v619 = vmul.f32 %v524, %v524
      %v620 = vmul.f32 %v527, %v527
      %v621 = vmul.f32 %v532, %v532
      %v622 = vmul.f32 %v535, %v535
      %v623 = vmul.f32 %v540, %v540
      %v624 = vmul.f32 %v543, %v543
      %v625 = vmul.f32 %v548, %v548
      %v626 = vmul.f32 %v551, %v551
      %v627 = vadd.f32 %v595, %v596
      %v628 = vadd.f32 %v627, %v597
      %v629 = vadd.f32 %v628, %v598
      %v630 = vadd.f32 %v629, %v599
      %v631 = vadd.f32 %v630, %v600
      %v632 = vadd.f32 %v631, %v601
      %v633 = vadd.f32 %v632, %v602
      %v634 = vadd.f32 %v633, %v603
      %v635 = vadd.f32 %v634, %v604
      %v636 = vadd.f32 %v635, %v605
      %v637 = vadd.f32 %v636, %v606
      %v638 = vadd.f32 %v637, %v607
      %v639 = vadd.f32 %v638, %v608
      %v640 = vadd.f32 %v639, %v609
      %v641 = vadd.f32 %v640, %v610
      %v642 = vadd.f32 %v641, %v611
      %v643 = vadd.f32 %v642, %v612
      %v644 = vadd.f32 %v643, %v613
      %v645 = vadd.f32 %v644, %v614
      %v646 = vadd.f32 %v645, %v615
      %v647 = vadd.f32 %v646, %v616
      %v648 = vadd.f32 %v647, %v617
      %v649 = vadd.f32 %v648, %v618
      %v650 = vadd.f32 %v649, %v619
      %v651 = vadd.f32 %v650, %v620
      %v652 = vadd.f32 %v651, %v621
      %v653 = vadd.f32 %v652, %v622
      %v654 = vadd.f32 %v653, %v623
      %v655 = vadd.f32 %v654, %v624
      %v656 = vadd.f32 %v655, %v625
      %v657 = vadd.f32 %v656, %v626
      %v658 = vrot.slane %v657, 4
      %v659 = vadd.f32 %v657, %v658
      %v660 = vrot.slane %v659, 2
      %v661 = vadd.f32 %v659, %v660
      %v662 = vrot.slane %v661, 1
      %v663 = vadd.f32 %v661, %v662
      %v664 = vadd.f32 %v594, %v663
      %665 = vst [vmem:[%s200] sm:$0xff] %v664
      %p666 = scmp.lt.s32.totalorder %s19, 1
      %s667 = scalar_select %p666, %s19, 1
      %s668 = smul.addr %s667, 8
      %s669 = scalar_lea.vmem %s2, %s668
      %p670 = scmp.lt.s32.totalorder %s19, 1
      %s671 = scalar_select %p670, %s19, 1
      %s672 = smul.addr %s671, 8
      %s673 = scalar_lea.vmem %s3, %s672
      // Predicated region
      $region33: #{single_conv.2} parent=27 // pred_check
        %p674 = pneg %p94
      $region34: #{single_conv.2} parent=27 // pred_check_branch
        %676 = sbr.rel (%p674) target = $region36
      $region35: #{single_conv.2} parent=27 // pred_region
        _
      $region36: #{single_conv.2} parent=27 // pred_fallthru
        _
      // Predicated region
      $region37: #{single_conv.2} parent=27 // pred_check
        %p677 = pneg %p120
      $region38: #{single_conv.2} parent=27 // pred_check_branch
        %679 = sbr.rel (%p677) target = $region40
      $region39: #{single_conv.2} parent=27 // pred_region
        _
      $region40: #{single_conv.2} parent=27 // pred_fallthru
        _
    $region28: #{single_conv.2} parent=5 // pred_fallthru
      _
    %p680 = scmp.le.s32.totalorder 2, %s10
    // Predicated region
    $region41: #{single_conv.2} parent=5 // pred_check
      %p681 = pneg %p680
    $region42: #{single_conv.2} parent=5 // pred_check_branch
      %683 = sbr.rel (%p681) target = $region44
    $region43: #{single_conv.2} parent=5 // pred_region
      %s684 = ssub.s32 %s10, 2
      // Predicated region
      $region45: #{single_conv.2} parent=43 // pred_check
        %p685 = pneg %p100
      $region46: #{single_conv.2} parent=43 // pred_check_branch
        %687 = sbr.rel (%p685) target = $region48
      $region47: #{single_conv.2} parent=43 // pred_region
        %p688 = scmp.lt.s32.totalorder %s21, 1
        %s689 = scalar_select %p688, %s21, 1
        %s690 = smul.addr %s689, 8
        %s691 = scalar_lea.vmem %s2, %s690
      $region48: #{single_conv.2} parent=43 // pred_fallthru
        _
      // Predicated region
      $region49: #{single_conv.2} parent=43 // pred_check
        %p692 = pneg %p126
      $region50: #{single_conv.2} parent=43 // pred_check_branch
        %694 = sbr.rel (%p692) target = $region52
      $region51: #{single_conv.2} parent=43 // pred_region
        %p695 = scmp.lt.s32.totalorder %s21, 1
        %s696 = scalar_select %p695, %s21, 1
        %s697 = smul.addr %s696, 8
        %s698 = scalar_lea.vmem %s3, %s697
      $region52: #{single_conv.2} parent=43 // pred_fallthru
        _
    $region44: #{single_conv.2} parent=5 // pred_fallthru
      _
  $region6: #{single_conv.2} parent=0 // loop_footer
    %s14 = sadd.s32 1, %s10
  $region7: #{single_conv.2} parent=0 // loop_footer_branch
    %9 = sbr.rel target = $region3
  $region8: #{single_conv.2} parent=0 // loop_exit
    _

// kernel: single_conv.3
$region0: #{single_conv.3}
  #allocation0 [shape = 'u32[]', space=smem, size = 0x4, offset = 0x4, fixed_abs, tag = 'smem constant byte address 0x4 - core index']
  #allocation1 [shape = 'u32[144,128]{1,0:T(1,128)}', space=vmem, size = 0x12000, scoped, tag = 'internal scratch']
  %s0 = inlined_call_operand.vmem [shape: bf16[512,48], index: 0, kind: input, shape index: {}]
  %s1 = inlined_call_operand.vmem [shape: bf16[48,128], index: 1, kind: input, shape index: {}]
  %s2 = inlined_call_operand.vmem [shape: f32[1,128], index: 2, kind: input, shape index: {}]
  %s3 = inlined_call_operand.vmem [shape: f32[1,128], index: 3, kind: input, shape index: {}]
  %s4 = inlined_call_operand.vmem [shape: bf16[512,128], index: 4, kind: output, shape index: {}]
  %s5 = sld [smem:[#allocation0]]
  $region49: #{single_conv.3} parent=0
    _
  %s7 = ssub.s32 1, %s5
  %s8 = scalar_select 0, %s7, %s5
  loop: start=0, step=1, limit=4
  $region2: #{single_conv.3} parent=0 // loop_pre_header
    _
  $region3: #{single_conv.3} parent=0 // loop_header
    %s10 = sphi 0, %s14
    %p11 = scmp.ge.s32.totalorder %s10, 4
    %s20 = sphi 0, %s22
    %s23 = sphi 0, %s20
    %s24 = sphi 0, %s23
    %s40 = sphi 0, %s24
    %s44 = sphi 0, %s44
    %s46 = sphi 0, %s44
    %s47 = sphi 0, %s46
    %s61 = sphi 0, %s47
    %s65 = sphi 0, %s65
    %s67 = sphi 0, %s65
    %s68 = sphi 0, %s67
    %s82 = sphi 0, %s68
    %s86 = sphi 0, %s86
    %s88 = sphi 0, %s86
    %s89 = sphi 0, %s88
    %s103 = sphi 0, %s89
    %s109 = sphi 0, %s111
    %s112 = sphi 0, %s109
    %s113 = sphi 0, %s112
    %s129 = sphi 0, %s113
  $region4: #{single_conv.3} parent=0 // loop_header_branch
    %13 = sbr.rel (%p11) target = $region8
  $region5: #{single_conv.3} parent=0 // loop_body
    %s15 = ssub.s32 %s10, 1
    %s16 = ssub.s32 %s10, 2
    %s17 = sadd.s32 %s10, 1
    %s18 = ssub.s32 %s10, %s17
    %p19 = scmp.eq.s32.totalorder %s18, 0
    %s21 = sadd.s32 %s20, 1
    %s22 = scalar_select %p19, %s20, %s21
    %p25 = pneg %p19
    %p26 = scmp.eq.s32.totalorder %s10, 1
    %p27 = por %p25, %p26
    %p28 = scmp.ne.s32.totalorder %s20, %s23
    %p29 = scmp.eq.s32.totalorder %s10, 0
    %p30 = por %p28, %p29
    %p31 = scmp.ne.s32.totalorder %s20, %s23
    %p32 = scmp.eq.s32.totalorder %s15, 1
    %p33 = por %p31, %p32
    %p34 = scmp.ne.s32.totalorder %s23, %s24
    %p35 = scmp.eq.s32.totalorder %s15, 0
    %p36 = por %p34, %p35
    %p37 = scmp.ne.s32.totalorder %s23, %s24
    %p38 = scmp.eq.s32.totalorder %s16, 1
    %p39 = por %p37, %p38
    %p41 = scmp.ne.s32.totalorder %s24, %s40
    %p42 = scmp.eq.s32.totalorder %s16, 0
    %p43 = por %p41, %p42
    %s45 = sadd.s32 %s44, 1
    %p48 = scmp.eq.s32.totalorder %s10, 1
    %p49 = scmp.ne.s32.totalorder %s44, %s46
    %p50 = scmp.eq.s32.totalorder %s10, 0
    %p51 = por %p49, %p50
    %p52 = scmp.ne.s32.totalorder %s44, %s46
    %p53 = scmp.eq.s32.totalorder %s15, 1
    %p54 = por %p52, %p53
    %p55 = scmp.ne.s32.totalorder %s46, %s47
    %p56 = scmp.eq.s32.totalorder %s15, 0
    %p57 = por %p55, %p56
    %p58 = scmp.ne.s32.totalorder %s46, %s47
    %p59 = scmp.eq.s32.totalorder %s16, 1
    %p60 = por %p58, %p59
    %p62 = scmp.ne.s32.totalorder %s47, %s61
    %p63 = scmp.eq.s32.totalorder %s16, 0
    %p64 = por %p62, %p63
    %s66 = sadd.s32 %s65, 1
    %p69 = scmp.eq.s32.totalorder %s10, 1
    %p70 = scmp.ne.s32.totalorder %s65, %s67
    %p71 = scmp.eq.s32.totalorder %s10, 0
    %p72 = por %p70, %p71
    %p73 = scmp.ne.s32.totalorder %s65, %s67
    %p74 = scmp.eq.s32.totalorder %s15, 1
    %p75 = por %p73, %p74
    %p76 = scmp.ne.s32.totalorder %s67, %s68
    %p77 = scmp.eq.s32.totalorder %s15, 0
    %p78 = por %p76, %p77
    %p79 = scmp.ne.s32.totalorder %s67, %s68
    %p80 = scmp.eq.s32.totalorder %s16, 1
    %p81 = por %p79, %p80
    %p83 = scmp.ne.s32.totalorder %s68, %s82
    %p84 = scmp.eq.s32.totalorder %s16, 0
    %p85 = por %p83, %p84
    %s87 = sadd.s32 %s86, 1
    %p90 = scmp.eq.s32.totalorder %s10, 1
    %p91 = scmp.ne.s32.totalorder %s86, %s88
    %p92 = scmp.eq.s32.totalorder %s10, 0
    %p93 = por %p91, %p92
    %p94 = scmp.ne.s32.totalorder %s86, %s88
    %p95 = scmp.eq.s32.totalorder %s15, 1
    %p96 = por %p94, %p95
    %p97 = scmp.ne.s32.totalorder %s88, %s89
    %p98 = scmp.eq.s32.totalorder %s15, 0
    %p99 = por %p97, %p98
    %p100 = scmp.ne.s32.totalorder %s88, %s89
    %p101 = scmp.eq.s32.totalorder %s16, 1
    %p102 = por %p100, %p101
    %p104 = scmp.ne.s32.totalorder %s89, %s103
    %p105 = scmp.eq.s32.totalorder %s16, 0
    %p106 = por %p104, %p105
    %s107 = ssub.s32 %s10, %s17
    %p108 = scmp.eq.s32.totalorder %s107, 0
    %s110 = sadd.s32 %s109, 1
    %s111 = scalar_select %p108, %s109, %s110
    %p114 = pneg %p108
    %p115 = scmp.eq.s32.totalorder %s10, 1
    %p116 = por %p114, %p115
    %p117 = scmp.ne.s32.totalorder %s109, %s112
    %p118 = scmp.eq.s32.totalorder %s10, 0
    %p119 = por %p117, %p118
    %p120 = scmp.ne.s32.totalorder %s109, %s112
    %p121 = scmp.eq.s32.totalorder %s15, 1
    %p122 = por %p120, %p121
    %p123 = scmp.ne.s32.totalorder %s112, %s113
    %p124 = scmp.eq.s32.totalorder %s15, 0
    %p125 = por %p123, %p124
    %p126 = scmp.ne.s32.totalorder %s112, %s113
    %p127 = scmp.eq.s32.totalorder %s16, 1
    %p128 = por %p126, %p127
    %p130 = scmp.ne.s32.totalorder %s113, %s129
    %p131 = scmp.eq.s32.totalorder %s16, 0
    %p132 = por %p130, %p131
    %p133 = scmp.le.s32.totalorder 1, %s10
    %p134 = scmp.lt.s32.totalorder %s10, 3
    %p135 = pnand %p133, %p134
    %p136 = pneg %p135
    // Predicated region
    $region9: #{single_conv.3} parent=5 // pred_check
      _
    $region10: #{single_conv.3} parent=5 // pred_check_branch
      %138 = sbr.rel (%p135) target = $region12
    $region11: #{single_conv.3} parent=5 // pred_region
      %s139 = ssub.s32 %s10, 1
      // Predicated region
      $region13: #{single_conv.3} parent=11 // pred_check
        %p140 = pneg %p57
      $region14: #{single_conv.3} parent=11 // pred_check_branch
        %142 = sbr.rel (%p140) target = $region16
      $region15: #{single_conv.3} parent=11 // pred_region
        _
      $region16: #{single_conv.3} parent=11 // pred_fallthru
        _
      // Predicated region
      $region17: #{single_conv.3} parent=11 // pred_check
        %p143 = pneg %p78
      $region18: #{single_conv.3} parent=11 // pred_check_branch
        %145 = sbr.rel (%p143) target = $region20
      $region19: #{single_conv.3} parent=11 // pred_region
        _
      $region20: #{single_conv.3} parent=11 // pred_fallthru
        _
      // Predicated region
      $region21: #{single_conv.3} parent=11 // pred_check
        %p146 = pneg %p99
      $region22: #{single_conv.3} parent=11 // pred_check_branch
        %148 = sbr.rel (%p146) target = $region24
      $region23: #{single_conv.3} parent=11 // pred_region
        _
      $region24: #{single_conv.3} parent=11 // pred_fallthru
        _
    $region12: #{single_conv.3} parent=5 // pred_fallthru
      _
    %p149 = scmp.lt.s32.totalorder %s10, 2
    // Predicated region
    $region25: #{single_conv.3} parent=5 // pred_check
      %p150 = pneg %p149
    $region26: #{single_conv.3} parent=5 // pred_check_branch
      %152 = sbr.rel (%p150) target = $region28
    $region27: #{single_conv.3} parent=5 // pred_region
      // Predicated region
      $region29: #{single_conv.3} parent=27 // pred_check
        %p153 = pneg %p30
      $region30: #{single_conv.3} parent=27 // pred_check_branch
        %155 = sbr.rel (%p153) target = $region32
      $region31: #{single_conv.3} parent=27 // pred_region
        %s156 = smul.u32 32, %s10
        %p157 = scmp.lt.s32.totalorder %s156, 63
        %s158 = scalar_select %p157, %s156, 63
        %s159 = smul.addr %s158, 4
        %s160 = scalar_lea.vmem %s0, %s159
        %s161 = smul.u32 32, %s10
      $region32: #{single_conv.3} parent=27 // pred_fallthru
        _
    $region28: #{single_conv.3} parent=5 // pred_fallthru
      _
    %p162 = scmp.le.s32.totalorder 1, %s10
    %p163 = scmp.lt.s32.totalorder %s10, 3
    %p164 = pnand %p162, %p163
    %p165 = pneg %p164
    // Predicated region
    $region33: #{single_conv.3} parent=5 // pred_check
      _
    $region34: #{single_conv.3} parent=5 // pred_check_branch
      %167 = sbr.rel (%p164) target = $region36
    $region35: #{single_conv.3} parent=5 // pred_region
      %s168 = ssub.s32 %s10, 1
      %s169 = smul.u32 32, %s15
      %p170 = scmp.lt.s32.totalorder %s169, 63
      %s171 = scalar_select %p170, %s169, 63
      %s172 = smul.addr %s171, 4
      %s173 = scalar_lea.vmem %s0, %s172
      %p174 = pneg %p36
      %p175 = pneg %p33
      %p176 = pneg %p57
      %p177 = pneg %p54
      %p178 = pneg %p78
      %p179 = pneg %p75
      %p180 = pneg %p99
      %p181 = pneg %p96
      %p182 = pneg %p125
      %p183 = pneg %p122
      %s184 = smul.u32 32, %s15
      %p185 = scmp.lt.s32.totalorder %s184, 63
      %s186 = scalar_select %p185, %s184, 63
      %s187 = smul.addr %s186, 4
      %s188 = scalar_lea.vmem %s4, %s187
      %s189 = smul.u32 32, %s15
      %p190 = scmp.lt.s32.totalorder %s189, 63
      %s191 = scalar_select %p190, %s189, 63
      %s192 = smul.addr %s191, 4
      %s193 = scalar_lea.vmem %s0, %s192
      %s194 = smul.u32 32, %s15
      %s195 = smul.u32 32, %s15
      %p196 = scmp.lt.s32.totalorder %s195, 63
      %s197 = scalar_select %p196, %s195, 63
      %s198 = smul.addr %s197, 4
      %s199 = scalar_lea.vmem %s4, %s198
      %s200 = smul.u32 32, %s15
      %v202 = vld [vmem:[%s193] sm:$0xf]
      %v203 = vld [vmem:[%s193 + $0x4] sm:$0xf]
      %v204 = vld [vmem:[%s193 + $0x8] sm:$0xf]
      %v205 = vld [vmem:[%s193 + $0xc] sm:$0xf]
      %v206 = vld [vmem:[%s193 + $0x10] sm:$0xf]
      %v207 = vld [vmem:[%s193 + $0x14] sm:$0xf]
      %v208 = vld [vmem:[%s193 + $0x18] sm:$0xf]
      %v209 = vld [vmem:[%s193 + $0x1c] sm:$0xf]
      %v210 = vld [vmem:[%s193 + $0x20] sm:$0xf]
      %v211 = vld [vmem:[%s193 + $0x24] sm:$0xf]
      %v212 = vld [vmem:[%s193 + $0x28] sm:$0xf]
      %v213 = vld [vmem:[%s193 + $0x2c] sm:$0xf]
      %v214 = vld [vmem:[%s193 + $0x30] sm:$0xf]
      %v215 = vld [vmem:[%s193 + $0x34] sm:$0xf]
      %v216 = vld [vmem:[%s193 + $0x38] sm:$0xf]
      %v217 = vld [vmem:[%s193 + $0x3c] sm:$0xf]
      %v218 = vld [vmem:[%s193 + $0x40] sm:$0xf]
      %v219 = vld [vmem:[%s193 + $0x44] sm:$0xf]
      %v220 = vld [vmem:[%s193 + $0x48] sm:$0xf]
      %v221 = vld [vmem:[%s193 + $0x4c] sm:$0xf]
      %v222 = vld [vmem:[%s193 + $0x50] sm:$0xf]
      %v223 = vld [vmem:[%s193 + $0x54] sm:$0xf]
      %v224 = vld [vmem:[%s193 + $0x58] sm:$0xf]
      %v225 = vld [vmem:[%s193 + $0x5c] sm:$0xf]
      %v226 = vld [vmem:[%s193 + $0x60] sm:$0xf]
      %v227 = vld [vmem:[%s193 + $0x64] sm:$0xf]
      %v228 = vld [vmem:[%s193 + $0x68] sm:$0xf]
      %v229 = vld [vmem:[%s193 + $0x6c] sm:$0xf]
      %v230 = vld [vmem:[%s193 + $0x70] sm:$0xf]
      %v231 = vld [vmem:[%s193 + $0x74] sm:$0xf]
      %v232 = vld [vmem:[%s193 + $0x78] sm:$0xf]
      %v233 = vld [vmem:[%s193 + $0x7c] sm:$0xf]
      %v234 = vld [vmem:[%s1] sm:$0xf]
      %v235 = vld [vmem:[%s1 + $0x4] sm:$0xf]
      %v236 = vld [vmem:[%s1 + $0x8] sm:$0xf]
      %v237 = vld [vmem:[%s1 + $0xc] sm:$0xf]
      %v238 = vld [vmem:[%s1 + $0x10] sm:$0xf]
      %v239 = vld [vmem:[%s1 + $0x14] sm:$0xf]
      %v272 = vunpack.c.l.b16 %v202
      %v273 = vunpack.c.l.b16 %v203
      %v274 = vunpack.c.l.b16 %v204
      %v275 = vunpack.c.l.b16 %v205
      %v276 = vunpack.c.l.b16 %v206
      %v277 = vunpack.c.l.b16 %v207
      %v278 = vunpack.c.l.b16 %v208
      %v279 = vunpack.c.l.b16 %v209
      %v280 = vunpack.c.l.b16 %v210
      %v281 = vunpack.c.l.b16 %v211
      %v282 = vunpack.c.l.b16 %v212
      %v283 = vunpack.c.l.b16 %v213
      %v284 = vunpack.c.l.b16 %v214
      %v285 = vunpack.c.l.b16 %v215
      %v286 = vunpack.c.l.b16 %v216
      %v287 = vunpack.c.l.b16 %v217
      %v288 = vunpack.c.l.b16 %v218
      %v289 = vunpack.c.l.b16 %v219
      %v290 = vunpack.c.l.b16 %v220
      %v291 = vunpack.c.l.b16 %v221
      %v292 = vunpack.c.l.b16 %v222
      %v293 = vunpack.c.l.b16 %v223
      %v294 = vunpack.c.l.b16 %v224
      %v295 = vunpack.c.l.b16 %v225
      %v296 = vunpack.c.l.b16 %v226
      %v297 = vunpack.c.l.b16 %v227
      %v298 = vunpack.c.l.b16 %v228
      %v299 = vunpack.c.l.b16 %v229
      %v300 = vunpack.c.l.b16 %v230
      %v301 = vunpack.c.l.b16 %v231
      %v302 = vunpack.c.l.b16 %v232
      %v303 = vunpack.c.l.b16 %v233
      %v304 = vpack.c.b16 %v273, %v272
      %v305 = vpack.c.b16 %v275, %v274
      %v306 = vpack.c.b16 %v277, %v276
      %v307 = vpack.c.b16 %v279, %v278
      %v308 = vpack.c.b16 %v281, %v280
      %v309 = vpack.c.b16 %v283, %v282
      %v310 = vpack.c.b16 %v285, %v284
      %v311 = vpack.c.b16 %v287, %v286
      %v312 = vpack.c.b16 %v289, %v288
      %v313 = vpack.c.b16 %v291, %v290
      %v314 = vpack.c.b16 %v293, %v292
      %v315 = vpack.c.b16 %v295, %v294
      %v316 = vpack.c.b16 %v297, %v296
      %v317 = vpack.c.b16 %v299, %v298
      %v318 = vpack.c.b16 %v301, %v300
      %v319 = vpack.c.b16 %v303, %v302
      %v326 = vunpack.c.l.b16 %v234
      %v327 = vunpack.c.l.b16 %v235
      %v328 = vunpack.c.l.b16 %v236
      %v329 = vunpack.c.l.b16 %v237
      %v330 = vunpack.c.l.b16 %v238
      %v331 = vunpack.c.l.b16 %v239
      %v332 = vpack.c.b16 %v327, %v326
      %v333 = vpack.c.b16 %v329, %v328
      %v334 = vpack.c.b16 %v331, %v330
      %vm338 = vcmask 392192
      %v340 = vsel %vm338, %v304, 0
      %v343 = vsel %vm338, %v305, 0
      %v346 = vsel %vm338, %v306, 0
      %v349 = vsel %vm338, %v307, 0
      %v352 = vsel %vm338, %v308, 0
      %v355 = vsel %vm338, %v309, 0
      %v358 = vsel %vm338, %v310, 0
      %v361 = vsel %vm338, %v311, 0
      %v364 = vsel %vm338, %v312, 0
      %v367 = vsel %vm338, %v313, 0
      %v370 = vsel %vm338, %v314, 0
      %v373 = vsel %vm338, %v315, 0
      %v376 = vsel %vm338, %v316, 0
      %v379 = vsel %vm338, %v317, 0
      %v382 = vsel %vm338, %v318, 0
      %v385 = vsel %vm338, %v319, 0
      %387 = vmatprep.subr.bf16.mxu0 0
      %388 = vmatpush1.bf16.msra.mxu0 0
      %389 = vmatprep.subr.bf16.mxu0 0
      %390 = vmatpush1.bf16.msra.mxu0 0
      %391 = vmatprep.subr.bf16.mxu0 0
      %392 = vmatpush1.bf16.msra.mxu0 0
      %393 = vmatprep.subr.bf16.mxu0 0
      %394 = vmatpush1.bf16.msra.mxu0 0
      %395 = vmatprep.subr.bf16.mxu0 0
      %396 = vmatpush1.bf16.msra.mxu0 0
      %397 = vmatprep.subr.bf16.mxu0 0
      %398 = vmatpush1.bf16.msra.mxu0 %v334
      %399 = vmatprep.subr.bf16.mxu0 0
      %400 = vmatpush1.bf16.msra.mxu0 %v333
      %401 = vmatprep.subr.bf16.mxu0 0
      %402 = vmatpush1.bf16.msra.mxu0 %v332
      %403 = vmatprep.subr.bf16.mxu0 0
      %404 = vmatpush2.bf16.msra.mxu0 0
      %405 = vmatprep.subr.bf16.mxu0 0
      %406 = vmatpush2.bf16.msra.mxu0 0
      %407 = vmatprep.subr.bf16.mxu0 0
      %408 = vmatpush2.bf16.msra.mxu0 0
      %409 = vmatprep.subr.bf16.mxu0 0
      %410 = vmatpush2.bf16.msra.mxu0 0
      %411 = vmatprep.subr.bf16.mxu0 0
      %412 = vmatpush2.bf16.msra.mxu0 0
      %413 = vmatprep.subr.bf16.mxu0 0
      %414 = vmatpush2.bf16.msra.mxu0 0
      %415 = vmatprep.subr.bf16.mxu0 0
      %416 = vmatpush2.bf16.msra.mxu0 0
      %417 = vmatprep.subr.bf16.mxu0 0
      %418 = vmatpush2.bf16.msra.mxu0 0
      %419 = vmatprep.mubr.bf16.mxu0 0
      %420 = vmatmul.mubr.bf16.gmra.mxu0 %v340
      %v421 = vpop.f32.mrf.mxu0
      %v422 = vadd.f32 0.0, %v421
      %v423 = vpop.f32.mrf.mxu0
      %v424 = vpop.f32.mrf.mxu0
      %v425 = vadd.f32 0.0, %v424
      %v426 = vpop.f32.mrf.mxu0
      %427 = vmatprep.mubr.bf16.mxu0 0
      %428 = vmatmul.mubr.bf16.gmra.mxu0 %v343
      %v429 = vpop.f32.mrf.mxu0
      %v430 = vadd.f32 0.0, %v429
      %v431 = vpop.f32.mrf.mxu0
      %v432 = vpop.f32.mrf.mxu0
      %v433 = vadd.f32 0.0, %v432
      %v434 = vpop.f32.mrf.mxu0
      %435 = vmatprep.mubr.bf16.mxu0 0
      %436 = vmatmul.mubr.bf16.gmra.mxu0 %v346
      %v437 = vpop.f32.mrf.mxu0
      %v438 = vadd.f32 0.0, %v437
      %v439 = vpop.f32.mrf.mxu0
      %v440 = vpop.f32.mrf.mxu0
      %v441 = vadd.f32 0.0, %v440
      %v442 = vpop.f32.mrf.mxu0
      %443 = vmatprep.mubr.bf16.mxu0 0
      %444 = vmatmul.mubr.bf16.gmra.mxu0 %v349
      %v445 = vpop.f32.mrf.mxu0
      %v446 = vadd.f32 0.0, %v445
      %v447 = vpop.f32.mrf.mxu0
      %v448 = vpop.f32.mrf.mxu0
      %v449 = vadd.f32 0.0, %v448
      %v450 = vpop.f32.mrf.mxu0
      %451 = vmatprep.mubr.bf16.mxu0 0
      %452 = vmatmul.mubr.bf16.gmra.mxu0 %v352
      %v453 = vpop.f32.mrf.mxu0
      %v454 = vadd.f32 0.0, %v453
      %v455 = vpop.f32.mrf.mxu0
      %v456 = vpop.f32.mrf.mxu0
      %v457 = vadd.f32 0.0, %v456
      %v458 = vpop.f32.mrf.mxu0
      %459 = vmatprep.mubr.bf16.mxu0 0
      %460 = vmatmul.mubr.bf16.gmra.mxu0 %v355
      %v461 = vpop.f32.mrf.mxu0
      %v462 = vadd.f32 0.0, %v461
      %v463 = vpop.f32.mrf.mxu0
      %v464 = vpop.f32.mrf.mxu0
      %v465 = vadd.f32 0.0, %v464
      %v466 = vpop.f32.mrf.mxu0
      %467 = vmatprep.mubr.bf16.mxu0 0
      %468 = vmatmul.mubr.bf16.gmra.mxu0 %v358
      %v469 = vpop.f32.mrf.mxu0
      %v470 = vadd.f32 0.0, %v469
      %v471 = vpop.f32.mrf.mxu0
      %v472 = vpop.f32.mrf.mxu0
      %v473 = vadd.f32 0.0, %v472
      %v474 = vpop.f32.mrf.mxu0
      %475 = vmatprep.mubr.bf16.mxu0 0
      %476 = vmatmul.mubr.bf16.gmra.mxu0 %v361
      %v477 = vpop.f32.mrf.mxu0
      %v478 = vadd.f32 0.0, %v477
      %v479 = vpop.f32.mrf.mxu0
      %v480 = vpop.f32.mrf.mxu0
      %v481 = vadd.f32 0.0, %v480
      %v482 = vpop.f32.mrf.mxu0
      %483 = vmatprep.mubr.bf16.mxu0 0
      %484 = vmatmul.mubr.bf16.gmra.mxu0 %v364
      %v485 = vpop.f32.mrf.mxu0
      %v486 = vadd.f32 0.0, %v485
      %v487 = vpop.f32.mrf.mxu0
      %v488 = vpop.f32.mrf.mxu0
      %v489 = vadd.f32 0.0, %v488
      %v490 = vpop.f32.mrf.mxu0
      %491 = vmatprep.mubr.bf16.mxu0 0
      %492 = vmatmul.mubr.bf16.gmra.mxu0 %v367
      %v493 = vpop.f32.mrf.mxu0
      %v494 = vadd.f32 0.0, %v493
      %v495 = vpop.f32.mrf.mxu0
      %v496 = vpop.f32.mrf.mxu0
      %v497 = vadd.f32 0.0, %v496
      %v498 = vpop.f32.mrf.mxu0
      %499 = vmatprep.mubr.bf16.mxu0 0
      %500 = vmatmul.mubr.bf16.gmra.mxu0 %v370
      %v501 = vpop.f32.mrf.mxu0
      %v502 = vadd.f32 0.0, %v501
      %v503 = vpop.f32.mrf.mxu0
      %v504 = vpop.f32.mrf.mxu0
      %v505 = vadd.f32 0.0, %v504
      %v506 = vpop.f32.mrf.mxu0
      %507 = vmatprep.mubr.bf16.mxu0 0
      %508 = vmatmul.mubr.bf16.gmra.mxu0 %v373
      %v509 = vpop.f32.mrf.mxu0
      %v510 = vadd.f32 0.0, %v509
      %v511 = vpop.f32.mrf.mxu0
      %v512 = vpop.f32.mrf.mxu0
      %v513 = vadd.f32 0.0, %v512
      %v514 = vpop.f32.mrf.mxu0
      %515 = vmatprep.mubr.bf16.mxu0 0
      %516 = vmatmul.mubr.bf16.gmra.mxu0 %v376
      %v517 = vpop.f32.mrf.mxu0
      %v518 = vadd.f32 0.0, %v517
      %v519 = vpop.f32.mrf.mxu0
      %v520 = vpop.f32.mrf.mxu0
      %v521 = vadd.f32 0.0, %v520
      %v522 = vpop.f32.mrf.mxu0
      %523 = vmatprep.mubr.bf16.mxu0 0
      %524 = vmatmul.mubr.bf16.gmra.mxu0 %v379
      %v525 = vpop.f32.mrf.mxu0
      %v526 = vadd.f32 0.0, %v525
      %v527 = vpop.f32.mrf.mxu0
      %v528 = vpop.f32.mrf.mxu0
      %v529 = vadd.f32 0.0, %v528
      %v530 = vpop.f32.mrf.mxu0
      %531 = vmatprep.mubr.bf16.mxu0 0
      %532 = vmatmul.mubr.bf16.gmra.mxu0 %v382
      %v533 = vpop.f32.mrf.mxu0
      %v534 = vadd.f32 0.0, %v533
      %v535 = vpop.f32.mrf.mxu0
      %v536 = vpop.f32.mrf.mxu0
      %v537 = vadd.f32 0.0, %v536
      %v538 = vpop.f32.mrf.mxu0
      %539 = vmatprep.mubr.bf16.mxu0 0
      %540 = vmatmul.mubr.bf16.gmra.mxu0 %v385
      %v541 = vpop.f32.mrf.mxu0
      %v542 = vadd.f32 0.0, %v541
      %v543 = vpop.f32.mrf.mxu0
      %v544 = vpop.f32.mrf.mxu0
      %v545 = vadd.f32 0.0, %v544
      %v546 = vpop.f32.mrf.mxu0
      %547 = vdwg.mxu0
      %v548 = vld [vmem:[%s2] sm:$0x1]
      %v550 = vlaneseq
      %v551 = vshrl.u32 %v550, 7
      %v552 = vsub.s32 0, %v551
      %v553 = vrot.slane %v548, %v552
      %v555 = vmul.f32 %v422, %v553
      %v556 = vmul.f32 %v425, %v553
      %v557 = vmul.f32 %v430, %v553
      %v558 = vmul.f32 %v433, %v553
      %v559 = vmul.f32 %v438, %v553
      %v560 = vmul.f32 %v441, %v553
      %v561 = vmul.f32 %v446, %v553
      %v562 = vmul.f32 %v449, %v553
      %v563 = vmul.f32 %v454, %v553
      %v564 = vmul.f32 %v457, %v553
      %v565 = vmul.f32 %v462, %v553
      %v566 = vmul.f32 %v465, %v553
      %v567 = vmul.f32 %v470, %v553
      %v568 = vmul.f32 %v473, %v553
      %v569 = vmul.f32 %v478, %v553
      %v570 = vmul.f32 %v481, %v553
      %v571 = vmul.f32 %v486, %v553
      %v572 = vmul.f32 %v489, %v553
      %v573 = vmul.f32 %v494, %v553
      %v574 = vmul.f32 %v497, %v553
      %v575 = vmul.f32 %v502, %v553
      %v576 = vmul.f32 %v505, %v553
      %v577 = vmul.f32 %v510, %v553
      %v578 = vmul.f32 %v513, %v553
      %v579 = vmul.f32 %v518, %v553
      %v580 = vmul.f32 %v521, %v553
      %v581 = vmul.f32 %v526, %v553
      %v582 = vmul.f32 %v529, %v553
      %v583 = vmul.f32 %v534, %v553
      %v584 = vmul.f32 %v537, %v553
      %v585 = vmul.f32 %v542, %v553
      %v586 = vmul.f32 %v545, %v553
      %v587 = vld [vmem:[%s3] sm:$0x1]
      %v589 = vlaneseq
      %v590 = vshrl.u32 %v589, 7
      %v591 = vsub.s32 0, %v590
      %v592 = vrot.slane %v587, %v591
      %v594 = vadd.f32 %v555, %v592
      %v595 = vadd.f32 %v556, %v592
      %v596 = vadd.f32 %v557, %v592
      %v597 = vadd.f32 %v558, %v592
      %v598 = vadd.f32 %v559, %v592
      %v599 = vadd.f32 %v560, %v592
      %v600 = vadd.f32 %v561, %v592
      %v601 = vadd.f32 %v562, %v592
      %v602 = vadd.f32 %v563, %v592
      %v603 = vadd.f32 %v564, %v592
      %v604 = vadd.f32 %v565, %v592
      %v605 = vadd.f32 %v566, %v592
      %v606 = vadd.f32 %v567, %v592
      %v607 = vadd.f32 %v568, %v592
      %v608 = vadd.f32 %v569, %v592
      %v609 = vadd.f32 %v570, %v592
      %v610 = vadd.f32 %v571, %v592
      %v611 = vadd.f32 %v572, %v592
      %v612 = vadd.f32 %v573, %v592
      %v613 = vadd.f32 %v574, %v592
      %v614 = vadd.f32 %v575, %v592
      %v615 = vadd.f32 %v576, %v592
      %v616 = vadd.f32 %v577, %v592
      %v617 = vadd.f32 %v578, %v592
      %v618 = vadd.f32 %v579, %v592
      %v619 = vadd.f32 %v580, %v592
      %v620 = vadd.f32 %v581, %v592
      %v621 = vadd.f32 %v582, %v592
      %v622 = vadd.f32 %v583, %v592
      %v623 = vadd.f32 %v584, %v592
      %v624 = vadd.f32 %v585, %v592
      %v625 = vadd.f32 %v586, %v592
      %v626 = vmax.f32 %v594, 0.0
      %v627 = vmax.f32 %v595, 0.0
      %v628 = vmax.f32 %v596, 0.0
      %v629 = vmax.f32 %v597, 0.0
      %v630 = vmax.f32 %v598, 0.0
      %v631 = vmax.f32 %v599, 0.0
      %v632 = vmax.f32 %v600, 0.0
      %v633 = vmax.f32 %v601, 0.0
      %v634 = vmax.f32 %v602, 0.0
      %v635 = vmax.f32 %v603, 0.0
      %v636 = vmax.f32 %v604, 0.0
      %v637 = vmax.f32 %v605, 0.0
      %v638 = vmax.f32 %v606, 0.0
      %v639 = vmax.f32 %v607, 0.0
      %v640 = vmax.f32 %v608, 0.0
      %v641 = vmax.f32 %v609, 0.0
      %v642 = vmax.f32 %v610, 0.0
      %v643 = vmax.f32 %v611, 0.0
      %v644 = vmax.f32 %v612, 0.0
      %v645 = vmax.f32 %v613, 0.0
      %v646 = vmax.f32 %v614, 0.0
      %v647 = vmax.f32 %v615, 0.0
      %v648 = vmax.f32 %v616, 0.0
      %v649 = vmax.f32 %v617, 0.0
      %v650 = vmax.f32 %v618, 0.0
      %v651 = vmax.f32 %v619, 0.0
      %v652 = vmax.f32 %v620, 0.0
      %v653 = vmax.f32 %v621, 0.0
      %v654 = vmax.f32 %v622, 0.0
      %v655 = vmax.f32 %v623, 0.0
      %v656 = vmax.f32 %v624, 0.0
      %v657 = vmax.f32 %v625, 0.0
      %v658 = vpack.c.bf16 %v627, %v626
      %v659 = vpack.c.bf16 %v629, %v628
      %v660 = vpack.c.bf16 %v631, %v630
      %v661 = vpack.c.bf16 %v633, %v632
      %v662 = vpack.c.bf16 %v635, %v634
      %v663 = vpack.c.bf16 %v637, %v636
      %v664 = vpack.c.bf16 %v639, %v638
      %v665 = vpack.c.bf16 %v641, %v640
      %v666 = vpack.c.bf16 %v643, %v642
      %v667 = vpack.c.bf16 %v645, %v644
      %v668 = vpack.c.bf16 %v647, %v646
      %v669 = vpack.c.bf16 %v649, %v648
      %v670 = vpack.c.bf16 %v651, %v650
      %v671 = vpack.c.bf16 %v653, %v652
      %v672 = vpack.c.bf16 %v655, %v654
      %v673 = vpack.c.bf16 %v657, %v656
      %v690 = vunpack.c.l.b16 %v658
      %v691 = vunpack.c.h.b16 %v658
      %v692 = vunpack.c.l.b16 %v659
      %v693 = vunpack.c.h.b16 %v659
      %v694 = vunpack.c.l.b16 %v660
      %v695 = vunpack.c.h.b16 %v660
      %v696 = vunpack.c.l.b16 %v661
      %v697 = vunpack.c.h.b16 %v661
      %v698 = vunpack.c.l.b16 %v662
      %v699 = vunpack.c.h.b16 %v662
      %v700 = vunpack.c.l.b16 %v663
      %v701 = vunpack.c.h.b16 %v663
      %v702 = vunpack.c.l.b16 %v664
      %v703 = vunpack.c.h.b16 %v664
      %v704 = vunpack.c.l.b16 %v665
      %v705 = vunpack.c.h.b16 %v665
      %v706 = vunpack.c.l.b16 %v666
      %v707 = vunpack.c.h.b16 %v666
      %v708 = vunpack.c.l.b16 %v667
      %v709 = vunpack.c.h.b16 %v667
      %v710 = vunpack.c.l.b16 %v668
      %v711 = vunpack.c.h.b16 %v668
      %v712 = vunpack.c.l.b16 %v669
      %v713 = vunpack.c.h.b16 %v669
      %v714 = vunpack.c.l.b16 %v670
      %v715 = vunpack.c.h.b16 %v670
      %v716 = vunpack.c.l.b16 %v671
      %v717 = vunpack.c.h.b16 %v671
      %v718 = vunpack.c.l.b16 %v672
      %v719 = vunpack.c.h.b16 %v672
      %v720 = vunpack.c.l.b16 %v673
      %v721 = vunpack.c.h.b16 %v673
      %v722 = vpack.c.b16 %v690, %v690
      %v723 = vpack.c.b16 %v691, %v691
      %v724 = vpack.c.b16 %v692, %v692
      %v725 = vpack.c.b16 %v693, %v693
      %v726 = vpack.c.b16 %v694, %v694
      %v727 = vpack.c.b16 %v695, %v695
      %v728 = vpack.c.b16 %v696, %v696
      %v729 = vpack.c.b16 %v697, %v697
      %v730 = vpack.c.b16 %v698, %v698
      %v731 = vpack.c.b16 %v699, %v699
      %v732 = vpack.c.b16 %v700, %v700
      %v733 = vpack.c.b16 %v701, %v701
      %v734 = vpack.c.b16 %v702, %v702
      %v735 = vpack.c.b16 %v703, %v703
      %v736 = vpack.c.b16 %v704, %v704
      %v737 = vpack.c.b16 %v705, %v705
      %v738 = vpack.c.b16 %v706, %v706
      %v739 = vpack.c.b16 %v707, %v707
      %v740 = vpack.c.b16 %v708, %v708
      %v741 = vpack.c.b16 %v709, %v709
      %v742 = vpack.c.b16 %v710, %v710
      %v743 = vpack.c.b16 %v711, %v711
      %v744 = vpack.c.b16 %v712, %v712
      %v745 = vpack.c.b16 %v713, %v713
      %v746 = vpack.c.b16 %v714, %v714
      %v747 = vpack.c.b16 %v715, %v715
      %v748 = vpack.c.b16 %v716, %v716
      %v749 = vpack.c.b16 %v717, %v717
      %v750 = vpack.c.b16 %v718, %v718
      %v751 = vpack.c.b16 %v719, %v719
      %v752 = vpack.c.b16 %v720, %v720
      %v753 = vpack.c.b16 %v721, %v721
      %786 = vst [vmem:[%s199] sm:$0xf] %v722
      %787 = vst [vmem:[%s199 + $0x4] sm:$0xf] %v723
      %788 = vst [vmem:[%s199 + $0x8] sm:$0xf] %v724
      %789 = vst [vmem:[%s199 + $0xc] sm:$0xf] %v725
      %790 = vst [vmem:[%s199 + $0x10] sm:$0xf] %v726
      %791 = vst [vmem:[%s199 + $0x14] sm:$0xf] %v727
      %792 = vst [vmem:[%s199 + $0x18] sm:$0xf] %v728
      %793 = vst [vmem:[%s199 + $0x1c] sm:$0xf] %v729
      %794 = vst [vmem:[%s199 + $0x20] sm:$0xf] %v730
      %795 = vst [vmem:[%s199 + $0x24] sm:$0xf] %v731
      %796 = vst [vmem:[%s199 + $0x28] sm:$0xf] %v732
      %797 = vst [vmem:[%s199 + $0x2c] sm:$0xf] %v733
      %798 = vst [vmem:[%s199 + $0x30] sm:$0xf] %v734
      %799 = vst [vmem:[%s199 + $0x34] sm:$0xf] %v735
      %800 = vst [vmem:[%s199 + $0x38] sm:$0xf] %v736
      %801 = vst [vmem:[%s199 + $0x3c] sm:$0xf] %v737
      %802 = vst [vmem:[%s199 + $0x40] sm:$0xf] %v738
      %803 = vst [vmem:[%s199 + $0x44] sm:$0xf] %v739
      %804 = vst [vmem:[%s199 + $0x48] sm:$0xf] %v740
      %805 = vst [vmem:[%s199 + $0x4c] sm:$0xf] %v741
      %806 = vst [vmem:[%s199 + $0x50] sm:$0xf] %v742
      %807 = vst [vmem:[%s199 + $0x54] sm:$0xf] %v743
      %808 = vst [vmem:[%s199 + $0x58] sm:$0xf] %v744
      %809 = vst [vmem:[%s199 + $0x5c] sm:$0xf] %v745
      %810 = vst [vmem:[%s199 + $0x60] sm:$0xf] %v746
      %811 = vst [vmem:[%s199 + $0x64] sm:$0xf] %v747
      %812 = vst [vmem:[%s199 + $0x68] sm:$0xf] %v748
      %813 = vst [vmem:[%s199 + $0x6c] sm:$0xf] %v749
      %814 = vst [vmem:[%s199 + $0x70] sm:$0xf] %v750
      %815 = vst [vmem:[%s199 + $0x74] sm:$0xf] %v751
      %816 = vst [vmem:[%s199 + $0x78] sm:$0xf] %v752
      %817 = vst [vmem:[%s199 + $0x7c] sm:$0xf] %v753
      %s818 = smul.u32 32, %s15
      %p819 = scmp.lt.s32.totalorder %s818, 63
      %s820 = scalar_select %p819, %s818, 63
      %s821 = smul.addr %s820, 4
      %s822 = scalar_lea.vmem %s4, %s821
      // Predicated region
      $region37: #{single_conv.3} parent=35 // pred_check
        %p823 = pneg %p122
      $region38: #{single_conv.3} parent=35 // pred_check_branch
        %825 = sbr.rel (%p823) target = $region40
      $region39: #{single_conv.3} parent=35 // pred_region
        %s826 = smul.u32 32, %s15
      $region40: #{single_conv.3} parent=35 // pred_fallthru
        _
    $region36: #{single_conv.3} parent=5 // pred_fallthru
      _
    %p827 = scmp.le.s32.totalorder 2, %s10
    // Predicated region
    $region41: #{single_conv.3} parent=5 // pred_check
      %p828 = pneg %p827
    $region42: #{single_conv.3} parent=5 // pred_check_branch
      %830 = sbr.rel (%p828) target = $region44
    $region43: #{single_conv.3} parent=5 // pred_region
      %s831 = ssub.s32 %s10, 2
      // Predicated region
      $region45: #{single_conv.3} parent=43 // pred_check
        %p832 = pneg %p128
      $region46: #{single_conv.3} parent=43 // pred_check_branch
        %834 = sbr.rel (%p832) target = $region48
      $region47: #{single_conv.3} parent=43 // pred_region
        %s835 = smul.u32 32, %s16
        %p836 = scmp.lt.s32.totalorder %s835, 63
        %s837 = scalar_select %p836, %s835, 63
        %s838 = smul.addr %s837, 4
        %s839 = scalar_lea.vmem %s4, %s838
      $region48: #{single_conv.3} parent=43 // pred_fallthru
        _
    $region44: #{single_conv.3} parent=5 // pred_fallthru
      _
  $region6: #{single_conv.3} parent=0 // loop_footer
    %s14 = sadd.s32 1, %s10
  $region7: #{single_conv.3} parent=0 // loop_footer_branch
    %9 = sbr.rel target = $region3
  $region8: #{single_conv.3} parent=0 // loop_exit
    _

</llo_original>
